<compile_context>
chip_gen: v7x
topology: tpu7x:2x2x1
jax: 0.10.0
libtpu: 0.0.40
codegen_flags: <defaults>
</compile_context>

<pallas_src>
import functools

import jax
import jax.numpy as jnp
from jax.experimental import pallas as pl
from jax.experimental.pallas import tpu as pltpu

_EPS = 1e-6


# ----------------------------------------------------------------------------
# Fused per-(layer, batch) loss kernel.
# Lane layout of the accumulated output row (per layer):
#   0: labels CE sum   1: attributes CE sum   2: |card_pred - n_tgt| sum
#   3: box L1 sum      4: (1 - GIoU) sum      5: contrastive sum
# ----------------------------------------------------------------------------
def _fused_loss_kernel(tlen_ref,                     # SMEM [B] int32 (scalar prefetch)
                       logits_ref,                    # (Q, C)  f32
                       attr_ref,                      # (Q, A)  f32
                       pbox_ref,                      # (4, Q)  f32  rows: cx,cy,w,h
                       img_ref,                       # (Q, D)  bf16
                       txt_ref,                       # (D, T)  bf16 (pre-transposed)
                       tsim_lab_ref,                  # (Q, C)  f32
                       tsim_att_ref,                  # (Q, A)  f32
                       eosw_ref,                      # (Q, 1)  f32
                       pos_ref,                       # (Q, T)  int8
                       tbox_ref,                      # (4, Q)  f32
                       match_ref,                     # (1, Q)  f32
                       out_ref,                       # (1, 128) f32 (resident over b)
                       *, inv_temp):
    b = pl.program_id(1)

    @pl.when(b == 0)
    def _init():
        out_ref[...] = jnp.zeros_like(out_ref)

    # ---- weighted soft-target CE (labels / attributes), no log_softmax tensor
    def _weighted_soft_ce(logits, tsim, eosw):
        m = jnp.max(logits, axis=-1, keepdims=True)                       # (Q,1)
        lse = m + jnp.log(jnp.sum(jnp.exp(logits - m), axis=-1, keepdims=True))
        loss_q = (lse * jnp.sum(tsim, axis=-1, keepdims=True)
                  - jnp.sum(logits * tsim, axis=-1, keepdims=True))       # (Q,1)
        return jnp.sum(loss_q * eosw)

    logits = logits_ref[...]                                              # (Q,C)
    eosw = eosw_ref[...]                                                  # (Q,1)
    ce_sum = _weighted_soft_ce(logits, tsim_lab_ref[...], eosw)
    attr_sum = _weighted_soft_ce(attr_ref[...], tsim_att_ref[...], eosw)

    # ---- cardinality (shares the pred_logits block with the CE path)
    max_front = jnp.max(logits[:, :-1], axis=-1, keepdims=True)           # (Q,1)
    not_empty = (max_front >= logits[:, -1:]).astype(jnp.float32)
    card_pred = jnp.sum(not_empty)
    card_err = jnp.abs(card_pred - tlen_ref[b].astype(jnp.float32))

    # ---- box L1 + GIoU on matched queries ([4, Q]: queries on lanes)
    s = pbox_ref[...]
    t = tbox_ref[...]
    mask = match_ref[...]                                                 # (1,Q)
    l1_sum = jnp.sum(jnp.abs(s - t) * mask)

    def _xyxy(bx):
        cx, cy, w, h = bx[0:1, :], bx[1:2, :], bx[2:3, :], bx[3:4, :]
        return cx - 0.5 * w, cy - 0.5 * h, cx + 0.5 * w, cy + 0.5 * h

    sx0, sy0, sx1, sy1 = _xyxy(s)
    tx0, ty0, tx1, ty1 = _xyxy(t)
    area_s = (sx1 - sx0) * (sy1 - sy0)
    area_t = (tx1 - tx0) * (ty1 - ty0)
    ix0 = jnp.maximum(sx0, tx0)
    iy0 = jnp.maximum(sy0, ty0)
    ix1 = jnp.minimum(sx1, tx1)
    iy1 = jnp.minimum(sy1, ty1)
    inter = jnp.maximum(ix1 - ix0, 0.0) * jnp.maximum(iy1 - iy0, 0.0)
    union = area_s + area_t - inter
    iou = inter / (union + _EPS)          # eps: avoid NaN on degenerate boxes
    cx0 = jnp.minimum(sx0, tx0)
    cy0 = jnp.minimum(sy0, ty0)
    cx1 = jnp.maximum(sx1, tx1)
    cy1 = jnp.maximum(sy1, ty1)
    area_c = (cx1 - cx0) * (cy1 - cy0)
    giou = iou - (area_c - union) / (area_c + _EPS)
    giou_sum = jnp.sum((1.0 - giou) * mask)

    # ---- contrastive alignment: bf16 MXU matmul, shared-max dual logsumexp
    logits_c = jnp.dot(img_ref[...], txt_ref[...],
                       preferred_element_type=jnp.float32) * inv_temp     # (Q,T) f32
    pos = pos_ref[...].astype(jnp.float32)                                # (Q,T)
    pos_logits = -(pos * logits_c)            # pos in {0,1}: one vmul, no select
    m_all = jnp.max(logits_c)                 # one shared max -> one exp() pass
    e = jnp.exp(logits_c - m_all)

    nb_q = jnp.sum(pos, axis=1, keepdims=True)                            # (Q,1)
    pos_q = jnp.sum(pos_logits, axis=1, keepdims=True)
    neg_q = m_all + jnp.log(jnp.sum(e, axis=1, keepdims=True))
    btt = jnp.sum(jnp.where(nb_q > 0, pos_q / (nb_q + _EPS) + neg_q, 0.0))

    nb_t = jnp.sum(pos, axis=0, keepdims=True)                            # (1,T)
    pos_t = jnp.sum(pos_logits, axis=0, keepdims=True)
    neg_t = m_all + jnp.log(jnp.sum(e, axis=0, keepdims=True))
    ttb = jnp.sum(jnp.where(nb_t > 0, pos_t / (nb_t + _EPS) + neg_t, 0.0))
    contrast_sum = 0.5 * (btt + ttb)

    # ---- lane-dense accumulation into the per-layer output row
    lane = jax.lax.broadcasted_iota(jnp.int32, out_ref.shape, 1)          # (1,128)

    def put(i, v):
        return (lane == i).astype(jnp.float32) * v

    out_ref[...] += (put(0, ce_sum) + put(1, attr_sum) + put(2, card_err)
                     + put(3, l1_sum) + put(4, giou_sum) + put(5, contrast_sum))


def _fused_losses(tgt_lengths, all_logits, all_attr, all_pbox_t, all_img,
                  all_txt_t, tsim_lab, tsim_att, eos_w, pos_map,
                  tgt_box_t, match_mask, temperature):
    L, B, Q, C = all_logits.shape
    A = all_attr.shape[-1]
    D = all_img.shape[-1]
    T = all_txt_t.shape[-1]

    kern = functools.partial(_fused_loss_kernel, inv_temp=1.0 / float(temperature))

    grid_spec = pltpu.PrefetchScalarGridSpec(
        num_scalar_prefetch=1,
        grid=(L, B),
        in_specs=[
            pl.BlockSpec((None, None, Q, C), lambda l, b, tl: (l, b, 0, 0)),  # logits
            pl.BlockSpec((None, None, Q, A), lambda l, b, tl: (l, b, 0, 0)),  # attrs
            pl.BlockSpec((None, None, 4, Q), lambda l, b, tl: (l, b, 0, 0)),  # pred boxes^T
            pl.BlockSpec((None, None, Q, D), lambda l, b, tl: (l, b, 0, 0)),  # img emb bf16
            pl.BlockSpec((None, None, D, T), lambda l, b, tl: (l, b, 0, 0)),  # txt emb^T bf16
            pl.BlockSpec((None, Q, C), lambda l, b, tl: (b, 0, 0)),           # tsim labels
            pl.BlockSpec((None, Q, A), lambda l, b, tl: (b, 0, 0)),           # tsim attrs
            pl.BlockSpec((None, Q, 1), lambda l, b, tl: (b, 0, 0)),           # eos weights
            pl.BlockSpec((None, Q, T), lambda l, b, tl: (b, 0, 0)),           # pos map int8
            pl.BlockSpec((None, 4, Q), lambda l, b, tl: (b, 0, 0)),           # tgt boxes^T
            pl.BlockSpec((None, 1, Q), lambda l, b, tl: (b, 0, 0)),           # match mask
        ],
        out_specs=pl.BlockSpec((None, 1, 128), lambda l, b, tl: (l, 0, 0)),
    )

    # Explicit scoped-VMEM budget from the per-block footprint (double-buffered
    # inputs + in-kernel f32 temporaries), capped at v7x's 64 MiB physical VMEM.
    bytes_per_block = (Q * C * 4 + Q * A * 4 + 4 * Q * 4 + Q * D * 2 + D * T * 2
                       + Q * C * 4 + Q * A * 4 + Q * 4 + Q * T + 4 * Q * 4
                       + Q * 4 + 128 * 4)
    vmem_limit = int(min(max(4 * bytes_per_block + 3 * Q * T * 4 + (8 << 20),
                             16 << 20), 64 << 20))

    out = pl.pallas_call(
        kern,
        out_shape=jax.ShapeDtypeStruct((L, 1, 128), jnp.float32),
        grid_spec=grid_spec,
        compiler_params=pltpu.CompilerParams(
            dimension_semantics=("parallel", "arbitrary"),
            vmem_limit_bytes=vmem_limit),
    )(tgt_lengths, all_logits, all_attr, all_pbox_t, all_img, all_txt_t,
      tsim_lab, tsim_att, eos_w, pos_map, tgt_box_t, match_mask)
    return out[:, 0, :]                                                    # [L,128]


# ----------------------------------------------------------------------------
# SetCriterion wrapper (plain-JAX glue around the single fused Pallas launch)
# ----------------------------------------------------------------------------
class SetCriterionPallas:
    def __init__(self, num_classes, eos_coef, losses, temperature):
        self.num_classes = num_classes
        self.eos_coef = float(eos_coef)
        self.losses = losses
        self.temperature = float(temperature)
        # registered buffer kept for parity; the soft-CE path never indexes it.
        self.empty_weight = jnp.ones((num_classes + 1,), jnp.float32).at[-1].set(eos_coef)

    # ---- deterministic matcher stand-in ------------------------------------
    def _match(self, outputs, targets):
        # TODO(synk): real Hungarian assignment; identity matching here.
        indices = []
        for t in targets:
            n = t["boxes"].shape[0]
            idx = jnp.arange(n, dtype=jnp.int32)
            indices.append((idx, idx))
        return indices

    def forward(self, outputs, targets, positive_map, positive_att):
        indices = self._match(outputs, targets)
        # TODO(synk): reference re-runs the matcher per aux layer; with identity
        # matching all layers share indices, so target tensors are built once.
        num_boxes = float(max(sum(t["labels"].shape[0] for t in targets), 1))

        B, Q, C = outputs["pred_logits"].shape
        A = outputs["pred_attributes"].shape[-1]
        D = outputs["proj_queries"].shape[-1]
        T = outputs["proj_tokens"].shape[1]

        # matched-index bookkeeping (host-side, tiny)
        batch_idx = jnp.concatenate(
            [jnp.full((src.shape[0],), i, jnp.int32) for i, (src, _) in enumerate(indices)])
        src_idx = jnp.concatenate([src for src, _ in indices])
        tgt_idx, off = [], 0
        for i, (_, tgt) in enumerate(indices):
            tgt_idx.append(tgt + off)
            off += targets[i]["boxes"].shape[0]
        tgt_idx = jnp.concatenate(tgt_idx)

        # shared target-side tensors (built once, reused by every decoder layer)
        tsim_lab = jnp.zeros((B, Q, C), jnp.float32).at[:, :, -1].set(1.0)
        tsim_lab = tsim_lab.at[batch_idx, src_idx].set(positive_map[tgt_idx])
        tsim_att = jnp.zeros((B, Q, A), jnp.float32).at[:, :, -1].set(1.0)
        tsim_att = tsim_att.at[batch_idx, src_idx].set(positive_att[tgt_idx])

        eos_w = jnp.full((B, Q), self.eos_coef, jnp.float32)
        eos_w = eos_w.at[batch_idx, src_idx].set(1.0)[..., None]               # [B,Q,1]
        match_mask = jnp.zeros((B, Q), jnp.float32)
        match_mask = match_mask.at[batch_idx, src_idx].set(1.0)[:, None, :]    # [B,1,Q]

        tgt_boxes_cat = jnp.concatenate(
            [t["boxes"][ti] for t, (_, ti) in zip(targets, indices)], axis=0)
        tgt_boxes = jnp.zeros((B, Q, 4), jnp.float32)
        tgt_boxes = tgt_boxes.at[batch_idx, src_idx].set(tgt_boxes_cat)
        tgt_boxes_t = jnp.transpose(tgt_boxes, (0, 2, 1))                      # [B,4,Q]

        all_tok = jnp.concatenate([t["tokens_positive_map"] for t in targets], 0)
        pos_map = jnp.zeros((B, Q, T), jnp.int8)
        pos_map = pos_map.at[batch_idx, src_idx].set(all_tok[tgt_idx].astype(jnp.int8))

        tgt_lengths = jnp.asarray([t["labels"].shape[0] for t in targets], jnp.int32)

        # stack decoder layers (main + aux) -> one fused launch over a layer axis
        layer_outs = [outputs] + list(outputs.get("aux_outputs", []))
        n_layers = len(layer_outs)

        def stack(key, shape, dtype=jnp.float32):
            arrs = [o[key] if key in o else jnp.zeros(shape, dtype) for o in layer_outs]
            return jnp.stack(arrs, 0)

        all_logits = stack("pred_logits", (B, Q, C))
        all_attr = stack("pred_attributes", (B, Q, A))
        all_pbox_t = jnp.transpose(stack("pred_boxes", (B, Q, 4)), (0, 1, 3, 2))   # [L,B,4,Q]
        all_img = stack("proj_queries", (B, Q, D)).astype(jnp.bfloat16)
        all_txt_t = jnp.transpose(stack("proj_tokens", (B, T, D)),
                                  (0, 1, 3, 2)).astype(jnp.bfloat16)               # [L,B,D,T]

        raw = _fused_losses(tgt_lengths, all_logits, all_attr, all_pbox_t, all_img,
                            all_txt_t, tsim_lab, tsim_att, eos_w, pos_map,
                            tgt_boxes_t, match_mask, self.temperature)             # [L,128]

        def layer_losses(row):
            return {
                "labels": {"loss_ce": row[0] / num_boxes},
                "attributes": {"loss_attributes": row[1] / num_boxes},
                "cardinality": {"cardinality_error":
                                jax.lax.stop_gradient(row[2] / float(B))},
                "boxes": {"loss_bbox": row[3] / num_boxes,
                          "loss_giou": row[4] / num_boxes},
                "contrastive_align": {"loss_contrastive_align": row[5] / num_boxes},
            }

        valid = {"labels", "attributes", "cardinality", "boxes",
                 "contrastive_align", "masks"}
        for loss in self.losses:
            assert loss in valid, f"do you really want to compute {loss} loss?"

        losses = {}
        main = layer_losses(raw[0])
        for loss in self.losses:
            if loss == "masks":
                continue   # TODO(synk): loss_masks not implemented
            losses.update(main[loss])
        for li in range(1, n_layers):
            aux = layer_losses(raw[li])
            for loss in self.losses:
                if loss == "masks":
                    continue
                losses.update({k + f"_{li - 1}": v for k, v in aux[loss].items()})
        return losses


# ----------------------------------------------------------------------------
# Example / smoke test
# ----------------------------------------------------------------------------
def _l2_normalize(x, axis=-1):
    return x / jnp.sqrt(jnp.sum(x * x, axis=axis, keepdims=True) + 1e-6)


if __name__ == "__main__":
    key = jax.random.PRNGKey(0)
    B, Q = 2, 8
    NUM_CLASSES = 31           # -> pred_logits last dim = 32
    L = NUM_CLASSES + 1
    A = 16                     # attribute classes (incl. no-attr slot)
    D = 16                     # contrastive embedding dim
    T = 16                     # number of text tokens
    NUM_AUX = 2                # aux decoder layers (exercise the layer grid axis)
    n_per_image = [3, 2]
    N = sum(n_per_image)

    ks = jax.random.split(key, 12)

    def make_layer(k):
        kk = jax.random.split(k, 5)
        return {
            "pred_logits": jax.random.normal(kk[0], (B, Q, L), jnp.float32),
            "pred_attributes": jax.random.normal(kk[1], (B, Q, A), jnp.float32),
            "pred_boxes": jax.nn.sigmoid(
                jax.random.normal(kk[2], (B, Q, 4), jnp.float32)) * 0.5 + 0.25,
            "proj_queries": _l2_normalize(
                jax.random.normal(kk[3], (B, Q, D), jnp.float32)),
            "proj_tokens": _l2_normalize(
                jax.random.normal(kk[4], (B, T, D), jnp.float32)),
        }

    outputs = make_layer(ks[0])
    outputs["aux_outputs"] = [make_layer(jax.random.fold_in(ks[1], i))
                              for i in range(NUM_AUX)]

    targets = []
    off = 0
    for i, n in enumerate(n_per_image):
        labels = jax.random.randint(jax.random.fold_in(ks[5], i), (n,), 0, NUM_CLASSES)
        boxes = jnp.concatenate([
            jax.random.uniform(jax.random.fold_in(ks[6], i), (n, 2), minval=0.3, maxval=0.7),
            jax.random.uniform(jax.random.fold_in(ks[7], i), (n, 2), minval=0.1, maxval=0.3),
        ], axis=1).astype(jnp.float32)                          # cx, cy, w, h
        tok_map = jnp.zeros((n, T), bool)
        for j in range(n):
            beg = (off + j) * 2 % (T - 2)
            tok_map = tok_map.at[j, beg:beg + 2].set(True)
        targets.append({"labels": labels, "boxes": boxes,
                        "tokens_positive_map": tok_map})
        off += n

    all_labels = jnp.concatenate([t["labels"] for t in targets])
    positive_map = jax.nn.one_hot(all_labels, L, dtype=jnp.float32)       # [N, L]
    att_labels = jax.random.randint(ks[8], (N,), 0, A - 1)
    positive_att = jax.nn.one_hot(att_labels, A, dtype=jnp.float32)       # [N, A]

    criterion = SetCriterionPallas(
        num_classes=NUM_CLASSES, eos_coef=0.1,
        losses=["labels", "attributes", "cardinality", "boxes", "contrastive_align"],
        temperature=0.07)

    losses = criterion.forward(outputs, targets, positive_map, positive_att)
    losses = jax.tree_util.tree_map(jax.block_until_ready, losses)
    for v in losses.values():
        assert jnp.isfinite(v), "non-finite loss"
    print("KERNEL_OK")
</pallas_src>

<mosaic_0001>
module attributes {stable_mosaic.version = 11 : i64} {
  func.func @_fused_loss_kernel(%arg0: i32, %arg1: i32, %arg2: memref<2xi32, #tpu.memory_space<smem>>, %arg3: memref<1x1x8x32xf32, #tpu.memory_space<vmem>>, %arg4: memref<1x1x8x16xf32, #tpu.memory_space<vmem>>, %arg5: memref<1x1x4x8xf32, #tpu.memory_space<vmem>>, %arg6: memref<1x1x8x16xbf16, #tpu.memory_space<vmem>>, %arg7: memref<1x1x16x16xbf16, #tpu.memory_space<vmem>>, %arg8: memref<1x8x32xf32, #tpu.memory_space<vmem>>, %arg9: memref<1x8x16xf32, #tpu.memory_space<vmem>>, %arg10: memref<1x8x1xf32, #tpu.memory_space<vmem>>, %arg11: memref<1x8x16xi8, #tpu.memory_space<vmem>>, %arg12: memref<1x4x8xf32, #tpu.memory_space<vmem>>, %arg13: memref<1x1x8xf32, #tpu.memory_space<vmem>>, %arg14: memref<1x1x128xf32, #tpu.memory_space<vmem>>) attributes {dimension_semantics = [#tpu.dimension_semantics<parallel>, #tpu.dimension_semantics<arbitrary>], iteration_bounds = array<i64: 3, 2>, scalar_prefetch = 1 : i64, scratch_operands = 0 : i64, tpu.core_type = #tpu.core_type<tc>, window_params = [{transform_indices = @transform_0, window_bounds = array<i64: 1, 1, 8, 32>}, {transform_indices = @transform_1, window_bounds = array<i64: 1, 1, 8, 16>}, {transform_indices = @transform_2, window_bounds = array<i64: 1, 1, 4, 8>}, {transform_indices = @transform_3, window_bounds = array<i64: 1, 1, 8, 16>}, {transform_indices = @transform_4, window_bounds = array<i64: 1, 1, 16, 16>}, {transform_indices = @transform_5, window_bounds = array<i64: 1, 8, 32>}, {transform_indices = @transform_6, window_bounds = array<i64: 1, 8, 16>}, {transform_indices = @transform_7, window_bounds = array<i64: 1, 8, 1>}, {transform_indices = @transform_8, window_bounds = array<i64: 1, 8, 16>}, {transform_indices = @transform_9, window_bounds = array<i64: 1, 4, 8>}, {transform_indices = @transform_10, window_bounds = array<i64: 1, 1, 8>}, {transform_indices = @transform_11, window_bounds = array<i64: 1, 1, 128>}]} {
    %c0_i32 = arith.constant 0 : i32
    %0 = arith.cmpi eq, %arg1, %c0_i32 : i32
    %1 = arith.extui %0 : i1 to i32
    %c0_i32_0 = arith.constant 0 : i32
    %2 = arith.cmpi ne, %1, %c0_i32_0 : i32
    scf.if %2 {
      %cst_90 = arith.constant 0.000000e+00 : f32
      %270 = vector.broadcast %cst_90 : f32 to vector<1x128xf32>
      %c0_91 = arith.constant 0 : index
      %c0_92 = arith.constant 0 : index
      %c0_93 = arith.constant 0 : index
      %271 = vector.load %arg14[%c0_91, %c0_92, %c0_93] : memref<1x1x128xf32, #tpu.memory_space<vmem>>, vector<1x1x128xf32>
      %272 = vector.shape_cast %271 : vector<1x1x128xf32> to vector<1x128xf32>
      %273 = vector.shape_cast %270 : vector<1x128xf32> to vector<1x1x128xf32>
      tpu.vector_store %arg14[%c0_91, %c0_92, %c0_93], %273 {strides = array<i32>} : memref<1x1x128xf32, #tpu.memory_space<vmem>>, vector<1x1x128xf32>,
    } else {
    }
    %c0 = arith.constant 0 : index
    %c0_1 = arith.constant 0 : index
    %c0_2 = arith.constant 0 : index
    %c0_3 = arith.constant 0 : index
    %3 = vector.load %arg3[%c0, %c0_1, %c0_2, %c0_3] : memref<1x1x8x32xf32, #tpu.memory_space<vmem>>, vector<1x1x8x32xf32>
    %4 = vector.shape_cast %3 : vector<1x1x8x32xf32> to vector<8x32xf32>
    %c0_4 = arith.constant 0 : index
    %c0_5 = arith.constant 0 : index
    %c0_6 = arith.constant 0 : index
    %5 = vector.load %arg10[%c0_4, %c0_5, %c0_6] : memref<1x8x1xf32, #tpu.memory_space<vmem>>, vector<1x8x1xf32>
    %6 = vector.shape_cast %5 : vector<1x8x1xf32> to vector<8x1xf32>
    %c0_7 = arith.constant 0 : index
    %c0_8 = arith.constant 0 : index
    %c0_9 = arith.constant 0 : index
    %7 = vector.load %arg8[%c0_7, %c0_8, %c0_9] : memref<1x8x32xf32, #tpu.memory_space<vmem>>, vector<1x8x32xf32>
    %8 = vector.shape_cast %7 : vector<1x8x32xf32> to vector<8x32xf32>
    %cst = arith.constant dense<0xFF800000> : vector<8xf32>
    %9 = vector.multi_reduction <maximumf>, %4, %cst [1] : vector<8x32xf32> to vector<8xf32>
    %10 = vector.shape_cast %9 : vector<8xf32> to vector<8x1xf32>
    %11 = vector.broadcast %10 : vector<8x1xf32> to vector<8x32xf32>
    %12 = arith.subf %4, %11 : vector<8x32xf32>
    %13 = math.exp %12 : vector<8x32xf32>
    %cst_10 = arith.constant dense<0.000000e+00> : vector<8xf32>
    %14 = vector.multi_reduction <add>, %13, %cst_10 [1] : vector<8x32xf32> to vector<8xf32>
    %15 = vector.shape_cast %14 : vector<8xf32> to vector<8x1xf32>
    %16 = math.log %15 : vector<8x1xf32>
    %17 = arith.addf %10, %16 : vector<8x1xf32>
    %cst_11 = arith.constant dense<0.000000e+00> : vector<8xf32>
    %18 = vector.multi_reduction <add>, %8, %cst_11 [1] : vector<8x32xf32> to vector<8xf32>
    %19 = vector.shape_cast %18 : vector<8xf32> to vector<8x1xf32>
    %20 = arith.mulf %17, %19 : vector<8x1xf32>
    %21 = arith.mulf %4, %8 : vector<8x32xf32>
    %cst_12 = arith.constant dense<0.000000e+00> : vector<8xf32>
    %22 = vector.multi_reduction <add>, %21, %cst_12 [1] : vector<8x32xf32> to vector<8xf32>
    %23 = vector.shape_cast %22 : vector<8xf32> to vector<8x1xf32>
    %24 = arith.subf %20, %23 : vector<8x1xf32>
    %25 = arith.mulf %24, %6 : vector<8x1xf32>
    %26 = vector.shape_cast %25 : vector<8x1xf32> to vector<1x8x1xf32>
    %cst_13 = arith.constant dense<0.000000e+00> : vector<1xf32>
    %27 = vector.multi_reduction <add>, %26, %cst_13 [1, 2] : vector<1x8x1xf32> to vector<1xf32>
    %28 = vector.shape_cast %27 : vector<1xf32> to vector<1x1x1xf32>
    %29 = vector.extract %28[0, 0, 0] : f32 from vector<1x1x1xf32>
    %c0_14 = arith.constant 0 : index
    %c0_15 = arith.constant 0 : index
    %c0_16 = arith.constant 0 : index
    %c0_17 = arith.constant 0 : index
    %30 = vector.load %arg4[%c0_14, %c0_15, %c0_16, %c0_17] : memref<1x1x8x16xf32, #tpu.memory_space<vmem>>, vector<1x1x8x16xf32>
    %31 = vector.shape_cast %30 : vector<1x1x8x16xf32> to vector<8x16xf32>
    %c0_18 = arith.constant 0 : index
    %c0_19 = arith.constant 0 : index
    %c0_20 = arith.constant 0 : index
    %32 = vector.load %arg9[%c0_18, %c0_19, %c0_20] : memref<1x8x16xf32, #tpu.memory_space<vmem>>, vector<1x8x16xf32>
    %33 = vector.shape_cast %32 : vector<1x8x16xf32> to vector<8x16xf32>
    %cst_21 = arith.constant dense<0xFF800000> : vector<8xf32>
    %34 = vector.multi_reduction <maximumf>, %31, %cst_21 [1] : vector<8x16xf32> to vector<8xf32>
    %35 = vector.shape_cast %34 : vector<8xf32> to vector<8x1xf32>
    %36 = vector.broadcast %35 : vector<8x1xf32> to vector<8x16xf32>
    %37 = arith.subf %31, %36 : vector<8x16xf32>
    %38 = math.exp %37 : vector<8x16xf32>
    %cst_22 = arith.constant dense<0.000000e+00> : vector<8xf32>
    %39 = vector.multi_reduction <add>, %38, %cst_22 [1] : vector<8x16xf32> to vector<8xf32>
    %40 = vector.shape_cast %39 : vector<8xf32> to vector<8x1xf32>
    %41 = math.log %40 : vector<8x1xf32>
    %42 = arith.addf %35, %41 : vector<8x1xf32>
    %cst_23 = arith.constant dense<0.000000e+00> : vector<8xf32>
    %43 = vector.multi_reduction <add>, %33, %cst_23 [1] : vector<8x16xf32> to vector<8xf32>
    %44 = vector.shape_cast %43 : vector<8xf32> to vector<8x1xf32>
    %45 = arith.mulf %42, %44 : vector<8x1xf32>
    %46 = arith.mulf %31, %33 : vector<8x16xf32>
    %cst_24 = arith.constant dense<0.000000e+00> : vector<8xf32>
    %47 = vector.multi_reduction <add>, %46, %cst_24 [1] : vector<8x16xf32> to vector<8xf32>
    %48 = vector.shape_cast %47 : vector<8xf32> to vector<8x1xf32>
    %49 = arith.subf %45, %48 : vector<8x1xf32>
    %50 = arith.mulf %49, %6 : vector<8x1xf32>
    %51 = vector.shape_cast %50 : vector<8x1xf32> to vector<1x8x1xf32>
    %cst_25 = arith.constant dense<0.000000e+00> : vector<1xf32>
    %52 = vector.multi_reduction <add>, %51, %cst_25 [1, 2] : vector<1x8x1xf32> to vector<1xf32>
    %53 = vector.shape_cast %52 : vector<1xf32> to vector<1x1x1xf32>
    %54 = vector.extract %53[0, 0, 0] : f32 from vector<1x1x1xf32>
    %55 = vector.extract_strided_slice %4 {offsets = [0, 0], sizes = [8, 31], strides = [1, 1]} : vector<8x32xf32> to vector<8x31xf32>
    %cst_26 = arith.constant dense<0xFF800000> : vector<8xf32>
    %56 = vector.multi_reduction <maximumf>, %55, %cst_26 [1] : vector<8x31xf32> to vector<8xf32>
    %57 = vector.shape_cast %56 : vector<8xf32> to vector<8x1xf32>
    %58 = vector.extract_strided_slice %4 {offsets = [0, 31], sizes = [8, 1], strides = [1, 1]} : vector<8x32xf32> to vector<8x1xf32>
    %59 = arith.cmpf oge, %57, %58 : vector<8x1xf32>
    %60 = arith.extui %59 : vector<8x1xi1> to vector<8x1xi32>
    %61 = arith.sitofp %60 : vector<8x1xi32> to vector<8x1xf32>
    %62 = vector.shape_cast %61 : vector<8x1xf32> to vector<1x8x1xf32>
    %cst_27 = arith.constant dense<0.000000e+00> : vector<1xf32>
    %63 = vector.multi_reduction <add>, %62, %cst_27 [1, 2] : vector<1x8x1xf32> to vector<1xf32>
    %64 = vector.shape_cast %63 : vector<1xf32> to vector<1x1x1xf32>
    %65 = vector.extract %64[0, 0, 0] : f32 from vector<1x1x1xf32>
    %66 = arith.index_cast %arg1 : i32 to index
    %67 = memref.load %arg2[%66] : memref<2xi32, #tpu.memory_space<smem>>
    %68 = arith.sitofp %67 : i32 to f32
    %69 = arith.subf %65, %68 : f32
    %70 = math.absf %69 : f32
    %c0_28 = arith.constant 0 : index
    %c0_29 = arith.constant 0 : index
    %c0_30 = arith.constant 0 : index
    %c0_31 = arith.constant 0 : index
    %71 = vector.load %arg5[%c0_28, %c0_29, %c0_30, %c0_31] : memref<1x1x4x8xf32, #tpu.memory_space<vmem>>, vector<1x1x4x8xf32>
    %72 = vector.shape_cast %71 : vector<1x1x4x8xf32> to vector<4x8xf32>
    %c0_32 = arith.constant 0 : index
    %c0_33 = arith.constant 0 : index
    %c0_34 = arith.constant 0 : index
    %73 = vector.load %arg12[%c0_32, %c0_33, %c0_34] : memref<1x4x8xf32, #tpu.memory_space<vmem>>, vector<1x4x8xf32>
    %74 = vector.shape_cast %73 : vector<1x4x8xf32> to vector<4x8xf32>
    %c0_35 = arith.constant 0 : index
    %c0_36 = arith.constant 0 : index
    %c0_37 = arith.constant 0 : index
    %75 = vector.load %arg13[%c0_35, %c0_36, %c0_37] : memref<1x1x8xf32, #tpu.memory_space<vmem>>, vector<1x1x8xf32>
    %76 = vector.shape_cast %75 : vector<1x1x8xf32> to vector<1x8xf32>
    %77 = arith.subf %72, %74 : vector<4x8xf32>
    %78 = math.absf %77 : vector<4x8xf32>
    %79 = vector.broadcast %76 : vector<1x8xf32> to vector<4x8xf32>
    %80 = arith.mulf %78, %79 : vector<4x8xf32>
    %81 = vector.shape_cast %80 : vector<4x8xf32> to vector<1x4x8xf32>
    %cst_38 = arith.constant dense<0.000000e+00> : vector<1xf32>
    %82 = vector.multi_reduction <add>, %81, %cst_38 [1, 2] : vector<1x4x8xf32> to vector<1xf32>
    %83 = vector.shape_cast %82 : vector<1xf32> to vector<1x1x1xf32>
    %84 = vector.extract %83[0, 0, 0] : f32 from vector<1x1x1xf32>
    %85 = vector.extract_strided_slice %72 {offsets = [0, 0], sizes = [1, 8], strides = [1, 1]} : vector<4x8xf32> to vector<1x8xf32>
    %86 = vector.extract_strided_slice %72 {offsets = [1, 0], sizes = [1, 8], strides = [1, 1]} : vector<4x8xf32> to vector<1x8xf32>
    %87 = vector.extract_strided_slice %72 {offsets = [2, 0], sizes = [1, 8], strides = [1, 1]} : vector<4x8xf32> to vector<1x8xf32>
    %88 = vector.extract_strided_slice %72 {offsets = [3, 0], sizes = [1, 8], strides = [1, 1]} : vector<4x8xf32> to vector<1x8xf32>
    %cst_39 = arith.constant 5.000000e-01 : f32
    %89 = vector.broadcast %cst_39 : f32 to vector<1x8xf32>
    %90 = arith.mulf %89, %87 : vector<1x8xf32>
    %91 = arith.subf %85, %90 : vector<1x8xf32>
    %cst_40 = arith.constant 5.000000e-01 : f32
    %92 = vector.broadcast %cst_40 : f32 to vector<1x8xf32>
    %93 = arith.mulf %92, %88 : vector<1x8xf32>
    %94 = arith.subf %86, %93 : vector<1x8xf32>
    %cst_41 = arith.constant 5.000000e-01 : f32
    %95 = vector.broadcast %cst_41 : f32 to vector<1x8xf32>
    %96 = arith.mulf %95, %87 : vector<1x8xf32>
    %97 = arith.addf %85, %96 : vector<1x8xf32>
    %cst_42 = arith.constant 5.000000e-01 : f32
    %98 = vector.broadcast %cst_42 : f32 to vector<1x8xf32>
    %99 = arith.mulf %98, %88 : vector<1x8xf32>
    %100 = arith.addf %86, %99 : vector<1x8xf32>
    %101 = vector.extract_strided_slice %74 {offsets = [0, 0], sizes = [1, 8], strides = [1, 1]} : vector<4x8xf32> to vector<1x8xf32>
    %102 = vector.extract_strided_slice %74 {offsets = [1, 0], sizes = [1, 8], strides = [1, 1]} : vector<4x8xf32> to vector<1x8xf32>
    %103 = vector.extract_strided_slice %74 {offsets = [2, 0], sizes = [1, 8], strides = [1, 1]} : vector<4x8xf32> to vector<1x8xf32>
    %104 = vector.extract_strided_slice %74 {offsets = [3, 0], sizes = [1, 8], strides = [1, 1]} : vector<4x8xf32> to vector<1x8xf32>
    %cst_43 = arith.constant 5.000000e-01 : f32
    %105 = vector.broadcast %cst_43 : f32 to vector<1x8xf32>
    %106 = arith.mulf %105, %103 : vector<1x8xf32>
    %107 = arith.subf %101, %106 : vector<1x8xf32>
    %cst_44 = arith.constant 5.000000e-01 : f32
    %108 = vector.broadcast %cst_44 : f32 to vector<1x8xf32>
    %109 = arith.mulf %108, %104 : vector<1x8xf32>
    %110 = arith.subf %102, %109 : vector<1x8xf32>
    %cst_45 = arith.constant 5.000000e-01 : f32
    %111 = vector.broadcast %cst_45 : f32 to vector<1x8xf32>
    %112 = arith.mulf %111, %103 : vector<1x8xf32>
    %113 = arith.addf %101, %112 : vector<1x8xf32>
    %cst_46 = arith.constant 5.000000e-01 : f32
    %114 = vector.broadcast %cst_46 : f32 to vector<1x8xf32>
    %115 = arith.mulf %114, %104 : vector<1x8xf32>
    %116 = arith.addf %102, %115 : vector<1x8xf32>
    %117 = arith.subf %97, %91 : vector<1x8xf32>
    %118 = arith.subf %100, %94 : vector<1x8xf32>
    %119 = arith.mulf %117, %118 : vector<1x8xf32>
    %120 = arith.subf %113, %107 : vector<1x8xf32>
    %121 = arith.subf %116, %110 : vector<1x8xf32>
    %122 = arith.mulf %120, %121 : vector<1x8xf32>
    %123 = arith.maximumf %91, %107 : vector<1x8xf32>
    %124 = arith.maximumf %94, %110 : vector<1x8xf32>
    %125 = arith.minimumf %97, %113 : vector<1x8xf32>
    %126 = arith.minimumf %100, %116 : vector<1x8xf32>
    %127 = arith.subf %125, %123 : vector<1x8xf32>
    %cst_47 = arith.constant 0.000000e+00 : f32
    %128 = vector.broadcast %cst_47 : f32 to vector<1x8xf32>
    %129 = arith.maximumf %127, %128 : vector<1x8xf32>
    %130 = arith.subf %126, %124 : vector<1x8xf32>
    %cst_48 = arith.constant 0.000000e+00 : f32
    %131 = vector.broadcast %cst_48 : f32 to vector<1x8xf32>
    %132 = arith.maximumf %130, %131 : vector<1x8xf32>
    %133 = arith.mulf %129, %132 : vector<1x8xf32>
    %134 = arith.addf %119, %122 : vector<1x8xf32>
    %135 = arith.subf %134, %133 : vector<1x8xf32>
    %cst_49 = arith.constant 9.99999997E-7 : f32
    %136 = vector.broadcast %cst_49 : f32 to vector<1x8xf32>
    %137 = arith.addf %135, %136 : vector<1x8xf32>
    %138 = arith.divf %133, %137 : vector<1x8xf32>
    %139 = arith.minimumf %91, %107 : vector<1x8xf32>
    %140 = arith.minimumf %94, %110 : vector<1x8xf32>
    %141 = arith.maximumf %97, %113 : vector<1x8xf32>
    %142 = arith.maximumf %100, %116 : vector<1x8xf32>
    %143 = arith.subf %141, %139 : vector<1x8xf32>
    %144 = arith.subf %142, %140 : vector<1x8xf32>
    %145 = arith.mulf %143, %144 : vector<1x8xf32>
    %146 = arith.subf %145, %135 : vector<1x8xf32>
    %cst_50 = arith.constant 9.99999997E-7 : f32
    %147 = vector.broadcast %cst_50 : f32 to vector<1x8xf32>
    %148 = arith.addf %145, %147 : vector<1x8xf32>
    %149 = arith.divf %146, %148 : vector<1x8xf32>
    %150 = arith.subf %138, %149 : vector<1x8xf32>
    %cst_51 = arith.constant 1.000000e+00 : f32
    %151 = vector.broadcast %cst_51 : f32 to vector<1x8xf32>
    %152 = arith.subf %151, %150 : vector<1x8xf32>
    %153 = arith.mulf %152, %76 : vector<1x8xf32>
    %154 = vector.shape_cast %153 : vector<1x8xf32> to vector<1x1x8xf32>
    %cst_52 = arith.constant dense<0.000000e+00> : vector<1xf32>
    %155 = vector.multi_reduction <add>, %154, %cst_52 [1, 2] : vector<1x1x8xf32> to vector<1xf32>
    %156 = vector.shape_cast %155 : vector<1xf32> to vector<1x1x1xf32>
    %157 = vector.extract %156[0, 0, 0] : f32 from vector<1x1x1xf32>
    %c0_53 = arith.constant 0 : index
    %c0_54 = arith.constant 0 : index
    %c0_55 = arith.constant 0 : index
    %c0_56 = arith.constant 0 : index
    %158 = vector.load %arg6[%c0_53, %c0_54, %c0_55, %c0_56] : memref<1x1x8x16xbf16, #tpu.memory_space<vmem>>, vector<1x1x8x16xbf16>
    %159 = vector.shape_cast %158 : vector<1x1x8x16xbf16> to vector<8x16xbf16>
    %c0_57 = arith.constant 0 : index
    %c0_58 = arith.constant 0 : index
    %c0_59 = arith.constant 0 : index
    %c0_60 = arith.constant 0 : index
    %160 = vector.load %arg7[%c0_57, %c0_58, %c0_59, %c0_60] : memref<1x1x16x16xbf16, #tpu.memory_space<vmem>>, vector<1x1x16x16xbf16>
    %161 = vector.shape_cast %160 : vector<1x1x16x16xbf16> to vector<16x16xbf16>
    %cst_61 = arith.constant dense<0.000000e+00> : vector<8x16xf32>
    %162 = tpu.matmul %159, %161, %cst_61 {dimension_numbers = #tpu.dot_dimension_numbers<[1], [0], [0], [1], [0, 0, 1, 1], [], []>} : vector<8x16xbf16>, vector<16x16xbf16>, vector<8x16xf32> -> vector<8x16xf32>
    %cst_62 = arith.constant 14.2857141 : f32
    %163 = vector.broadcast %cst_62 : f32 to vector<8x16xf32>
    %164 = arith.mulf %162, %163 : vector<8x16xf32>
    %c0_63 = arith.constant 0 : index
    %c0_64 = arith.constant 0 : index
    %c0_65 = arith.constant 0 : index
    %165 = vector.load %arg11[%c0_63, %c0_64, %c0_65] : memref<1x8x16xi8, #tpu.memory_space<vmem>>, vector<1x8x16xi8>
    %166 = vector.shape_cast %165 : vector<1x8x16xi8> to vector<8x16xi8>
    %167 = arith.sitofp %166 : vector<8x16xi8> to vector<8x16xf32>
    %168 = arith.mulf %167, %164 : vector<8x16xf32>
    %cst_66 = arith.constant 0.000000e+00 : f32
    %169 = vector.broadcast %cst_66 : f32 to vector<8x16xf32>
    %170 = arith.subf %169, %168 : vector<8x16xf32>
    %171 = vector.shape_cast %164 : vector<8x16xf32> to vector<1x8x16xf32>
    %cst_67 = arith.constant dense<0xFF800000> : vector<1xf32>
    %172 = vector.multi_reduction <maximumf>, %171, %cst_67 [1, 2] : vector<1x8x16xf32> to vector<1xf32>
    %173 = vector.shape_cast %172 : vector<1xf32> to vector<1x1x1xf32>
    %174 = vector.extract %173[0, 0, 0] : f32 from vector<1x1x1xf32>
    %175 = vector.broadcast %174 : f32 to vector<8x16xf32>
    %176 = arith.subf %164, %175 : vector<8x16xf32>
    %177 = math.exp %176 : vector<8x16xf32>
    %cst_68 = arith.constant dense<0.000000e+00> : vector<8xf32>
    %178 = vector.multi_reduction <add>, %167, %cst_68 [1] : vector<8x16xf32> to vector<8xf32>
    %179 = vector.shape_cast %178 : vector<8xf32> to vector<8x1xf32>
    %cst_69 = arith.constant dense<0.000000e+00> : vector<8xf32>
    %180 = vector.multi_reduction <add>, %170, %cst_69 [1] : vector<8x16xf32> to vector<8xf32>
    %181 = vector.shape_cast %180 : vector<8xf32> to vector<8x1xf32>
    %cst_70 = arith.constant dense<0.000000e+00> : vector<8xf32>
    %182 = vector.multi_reduction <add>, %177, %cst_70 [1] : vector<8x16xf32> to vector<8xf32>
    %183 = vector.shape_cast %182 : vector<8xf32> to vector<8x1xf32>
    %184 = math.log %183 : vector<8x1xf32>
    %185 = vector.broadcast %174 : f32 to vector<8x1xf32>
    %186 = arith.addf %185, %184 : vector<8x1xf32>
    %cst_71 = arith.constant 0.000000e+00 : f32
    %187 = vector.broadcast %cst_71 : f32 to vector<8x1xf32>
    %188 = arith.cmpf ogt, %179, %187 : vector<8x1xf32>
    %cst_72 = arith.constant 9.99999997E-7 : f32
    %189 = vector.broadcast %cst_72 : f32 to vector<8x1xf32>
    %190 = arith.addf %179, %189 : vector<8x1xf32>
    %191 = arith.divf %181, %190 : vector<8x1xf32>
    %192 = arith.addf %191, %186 : vector<8x1xf32>
    %cst_73 = arith.constant 0.000000e+00 : f32
    %193 = vector.broadcast %cst_73 : f32 to vector<8x1xf32>
    %194 = arith.select %188, %192, %193 : vector<8x1xi1>, vector<8x1xf32>
    %195 = vector.shape_cast %194 : vector<8x1xf32> to vector<1x8x1xf32>
    %cst_74 = arith.constant dense<0.000000e+00> : vector<1xf32>
    %196 = vector.multi_reduction <add>, %195, %cst_74 [1, 2] : vector<1x8x1xf32> to vector<1xf32>
    %197 = vector.shape_cast %196 : vector<1xf32> to vector<1x1x1xf32>
    %198 = vector.extract %197[0, 0, 0] : f32 from vector<1x1x1xf32>
    %cst_75 = arith.constant dense<0.000000e+00> : vector<16xf32>
    %199 = vector.multi_reduction <add>, %167, %cst_75 [0] : vector<8x16xf32> to vector<16xf32>
    %200 = vector.shape_cast %199 : vector<16xf32> to vector<1x16xf32>
    %cst_76 = arith.constant dense<0.000000e+00> : vector<16xf32>
    %201 = vector.multi_reduction <add>, %170, %cst_76 [0] : vector<8x16xf32> to vector<16xf32>
    %202 = vector.shape_cast %201 : vector<16xf32> to vector<1x16xf32>
    %cst_77 = arith.constant dense<0.000000e+00> : vector<16xf32>
    %203 = vector.multi_reduction <add>, %177, %cst_77 [0] : vector<8x16xf32> to vector<16xf32>
    %204 = vector.shape_cast %203 : vector<16xf32> to vector<1x16xf32>
    %205 = math.log %204 : vector<1x16xf32>
    %206 = vector.broadcast %174 : f32 to vector<1x16xf32>
    %207 = arith.addf %206, %205 : vector<1x16xf32>
    %cst_78 = arith.constant 0.000000e+00 : f32
    %208 = vector.broadcast %cst_78 : f32 to vector<1x16xf32>
    %209 = arith.cmpf ogt, %200, %208 : vector<1x16xf32>
    %cst_79 = arith.constant 9.99999997E-7 : f32
    %210 = vector.broadcast %cst_79 : f32 to vector<1x16xf32>
    %211 = arith.addf %200, %210 : vector<1x16xf32>
    %212 = arith.divf %202, %211 : vector<1x16xf32>
    %213 = arith.addf %212, %207 : vector<1x16xf32>
    %cst_80 = arith.constant 0.000000e+00 : f32
    %214 = vector.broadcast %cst_80 : f32 to vector<1x16xf32>
    %215 = arith.select %209, %213, %214 : vector<1x16xi1>, vector<1x16xf32>
    %216 = vector.shape_cast %215 : vector<1x16xf32> to vector<1x1x16xf32>
    %cst_81 = arith.constant dense<0.000000e+00> : vector<1xf32>
    %217 = vector.multi_reduction <add>, %216, %cst_81 [1, 2] : vector<1x1x16xf32> to vector<1xf32>
    %218 = vector.shape_cast %217 : vector<1xf32> to vector<1x1x1xf32>
    %219 = vector.extract %218[0, 0, 0] : f32 from vector<1x1x1xf32>
    %220 = arith.addf %198, %219 : f32
    %cst_82 = arith.constant 5.000000e-01 : f32
    %221 = arith.mulf %cst_82, %220 : f32
    %222 = tpu.iota {dimensions = array<i32: 1>} : vector<1x128xi32>
    %c0_83 = arith.constant 0 : index
    %c0_84 = arith.constant 0 : index
    %c0_85 = arith.constant 0 : index
    %223 = vector.load %arg14[%c0_83, %c0_84, %c0_85] : memref<1x1x128xf32, #tpu.memory_space<vmem>>, vector<1x1x128xf32>
    %224 = vector.shape_cast %223 : vector<1x1x128xf32> to vector<1x128xf32>
    %c0_i32_86 = arith.constant 0 : i32
    %225 = vector.broadcast %c0_i32_86 : i32 to vector<1x128xi32>
    %226 = arith.cmpi eq, %222, %225 : vector<1x128xi32>
    %227 = arith.extui %226 : vector<1x128xi1> to vector<1x128xi32>
    %228 = arith.sitofp %227 : vector<1x128xi32> to vector<1x128xf32>
    %229 = vector.broadcast %29 : f32 to vector<1x128xf32>
    %230 = arith.mulf %228, %229 : vector<1x128xf32>
    %c1_i32 = arith.constant 1 : i32
    %231 = vector.broadcast %c1_i32 : i32 to vector<1x128xi32>
    %232 = arith.cmpi eq, %222, %231 : vector<1x128xi32>
    %233 = arith.extui %232 : vector<1x128xi1> to vector<1x128xi32>
    %234 = arith.sitofp %233 : vector<1x128xi32> to vector<1x128xf32>
    %235 = vector.broadcast %54 : f32 to vector<1x128xf32>
    %236 = arith.mulf %234, %235 : vector<1x128xf32>
    %237 = arith.addf %230, %236 : vector<1x128xf32>
    %c2_i32 = arith.constant 2 : i32
    %238 = vector.broadcast %c2_i32 : i32 to vector<1x128xi32>
    %239 = arith.cmpi eq, %222, %238 : vector<1x128xi32>
    %240 = arith.extui %239 : vector<1x128xi1> to vector<1x128xi32>
    %241 = arith.sitofp %240 : vector<1x128xi32> to vector<1x128xf32>
    %242 = vector.broadcast %70 : f32 to vector<1x128xf32>
    %243 = arith.mulf %241, %242 : vector<1x128xf32>
    %244 = arith.addf %237, %243 : vector<1x128xf32>
    %c3_i32 = arith.constant 3 : i32
    %245 = vector.broadcast %c3_i32 : i32 to vector<1x128xi32>
    %246 = arith.cmpi eq, %222, %245 : vector<1x128xi32>
    %247 = arith.extui %246 : vector<1x128xi1> to vector<1x128xi32>
    %248 = arith.sitofp %247 : vector<1x128xi32> to vector<1x128xf32>
    %249 = vector.broadcast %84 : f32 to vector<1x128xf32>
    %250 = arith.mulf %248, %249 : vector<1x128xf32>
    %251 = arith.addf %244, %250 : vector<1x128xf32>
    %c4_i32 = arith.constant 4 : i32
    %252 = vector.broadcast %c4_i32 : i32 to vector<1x128xi32>
    %253 = arith.cmpi eq, %222, %252 : vector<1x128xi32>
    %254 = arith.extui %253 : vector<1x128xi1> to vector<1x128xi32>
    %255 = arith.sitofp %254 : vector<1x128xi32> to vector<1x128xf32>
    %256 = vector.broadcast %157 : f32 to vector<1x128xf32>
    %257 = arith.mulf %255, %256 : vector<1x128xf32>
    %258 = arith.addf %251, %257 : vector<1x128xf32>
    %c5_i32 = arith.constant 5 : i32
    %259 = vector.broadcast %c5_i32 : i32 to vector<1x128xi32>
    %260 = arith.cmpi eq, %222, %259 : vector<1x128xi32>
    %261 = arith.extui %260 : vector<1x128xi1> to vector<1x128xi32>
    %262 = arith.sitofp %261 : vector<1x128xi32> to vector<1x128xf32>
    %263 = vector.broadcast %221 : f32 to vector<1x128xf32>
    %264 = arith.mulf %262, %263 : vector<1x128xf32>
    %265 = arith.addf %258, %264 : vector<1x128xf32>
    %266 = arith.addf %224, %265 : vector<1x128xf32>
    %c0_87 = arith.constant 0 : index
    %c0_88 = arith.constant 0 : index
    %c0_89 = arith.constant 0 : index
    %267 = vector.load %arg14[%c0_87, %c0_88, %c0_89] : memref<1x1x128xf32, #tpu.memory_space<vmem>>, vector<1x1x128xf32>
    %268 = vector.shape_cast %267 : vector<1x1x128xf32> to vector<1x128xf32>
    %269 = vector.shape_cast %266 : vector<1x128xf32> to vector<1x1x128xf32>
    tpu.vector_store %arg14[%c0_87, %c0_88, %c0_89], %269 {strides = array<i32>} : memref<1x1x128xf32, #tpu.memory_space<vmem>>, vector<1x1x128xf32>,
    return
  }
  func.func @transform_0(%arg0: i32, %arg1: i32, %arg2: memref<2xi32, #tpu.memory_space<smem>>) -> (i32, i32, i32, i32) {
    %c0_i32 = arith.constant 0 : i32
    %c0_i32_0 = arith.constant 0 : i32
    %c0_i32_1 = arith.constant 0 : i32
    return %arg0, %arg1, %c0_i32, %c0_i32_0 : i32, i32, i32, i32
  }
  func.func @transform_1(%arg0: i32, %arg1: i32, %arg2: memref<2xi32, #tpu.memory_space<smem>>) -> (i32, i32, i32, i32) {
    %c0_i32 = arith.constant 0 : i32
    %c0_i32_0 = arith.constant 0 : i32
    %c0_i32_1 = arith.constant 0 : i32
    return %arg0, %arg1, %c0_i32, %c0_i32_0 : i32, i32, i32, i32
  }
  func.func @transform_2(%arg0: i32, %arg1: i32, %arg2: memref<2xi32, #tpu.memory_space<smem>>) -> (i32, i32, i32, i32) {
    %c0_i32 = arith.constant 0 : i32
    %c0_i32_0 = arith.constant 0 : i32
    %c0_i32_1 = arith.constant 0 : i32
    return %arg0, %arg1, %c0_i32, %c0_i32_0 : i32, i32, i32, i32
  }
  func.func @transform_3(%arg0: i32, %arg1: i32, %arg2: memref<2xi32, #tpu.memory_space<smem>>) -> (i32, i32, i32, i32) {
    %c0_i32 = arith.constant 0 : i32
    %c0_i32_0 = arith.constant 0 : i32
    %c0_i32_1 = arith.constant 0 : i32
    return %arg0, %arg1, %c0_i32, %c0_i32_0 : i32, i32, i32, i32
  }
  func.func @transform_4(%arg0: i32, %arg1: i32, %arg2: memref<2xi32, #tpu.memory_space<smem>>) -> (i32, i32, i32, i32) {
    %c0_i32 = arith.constant 0 : i32
    %c0_i32_0 = arith.constant 0 : i32
    %c0_i32_1 = arith.constant 0 : i32
    return %arg0, %arg1, %c0_i32, %c0_i32_0 : i32, i32, i32, i32
  }
  func.func @transform_5(%arg0: i32, %arg1: i32, %arg2: memref<2xi32, #tpu.memory_space<smem>>) -> (i32, i32, i32) {
    %c0_i32 = arith.constant 0 : i32
    %c0_i32_0 = arith.constant 0 : i32
    %c0_i32_1 = arith.constant 0 : i32
    return %arg1, %c0_i32, %c0_i32_0 : i32, i32, i32
  }
  func.func @transform_6(%arg0: i32, %arg1: i32, %arg2: memref<2xi32, #tpu.memory_space<smem>>) -> (i32, i32, i32) {
    %c0_i32 = arith.constant 0 : i32
    %c0_i32_0 = arith.constant 0 : i32
    %c0_i32_1 = arith.constant 0 : i32
    return %arg1, %c0_i32, %c0_i32_0 : i32, i32, i32
  }
  func.func @transform_7(%arg0: i32, %arg1: i32, %arg2: memref<2xi32, #tpu.memory_space<smem>>) -> (i32, i32, i32) {
    %c0_i32 = arith.constant 0 : i32
    %c0_i32_0 = arith.constant 0 : i32
    %c0_i32_1 = arith.constant 0 : i32
    return %arg1, %c0_i32, %c0_i32_0 : i32, i32, i32
  }
  func.func @transform_8(%arg0: i32, %arg1: i32, %arg2: memref<2xi32, #tpu.memory_space<smem>>) -> (i32, i32, i32) {
    %c0_i32 = arith.constant 0 : i32
    %c0_i32_0 = arith.constant 0 : i32
    %c0_i32_1 = arith.constant 0 : i32
    return %arg1, %c0_i32, %c0_i32_0 : i32, i32, i32
  }
  func.func @transform_9(%arg0: i32, %arg1: i32, %arg2: memref<2xi32, #tpu.memory_space<smem>>) -> (i32, i32, i32) {
    %c0_i32 = arith.constant 0 : i32
    %c0_i32_0 = arith.constant 0 : i32
    %c0_i32_1 = arith.constant 0 : i32
    return %arg1, %c0_i32, %c0_i32_0 : i32, i32, i32
  }
  func.func @transform_10(%arg0: i32, %arg1: i32, %arg2: memref<2xi32, #tpu.memory_space<smem>>) -> (i32, i32, i32) {
    %c0_i32 = arith.constant 0 : i32
    %c0_i32_0 = arith.constant 0 : i32
    %c0_i32_1 = arith.constant 0 : i32
    return %arg1, %c0_i32, %c0_i32_0 : i32, i32, i32
  }
  func.func @transform_11(%arg0: i32, %arg1: i32, %arg2: memref<2xi32, #tpu.memory_space<smem>>) -> (i32, i32, i32) {
    %c0_i32 = arith.constant 0 : i32
    %c0_i32_0 = arith.constant 0 : i32
    %c0_i32_1 = arith.constant 0 : i32
    return %arg0, %c0_i32, %c0_i32_0 : i32, i32, i32
  }
}

</mosaic_0001>

<llo_original>
// kernel: tpu_custom_call.1
$region0: #{tpu_custom_call.1}
  #allocation0 [shape = 'u32[]', space=smem, size = 0x4, offset = 0x4, fixed_abs, tag = 'smem constant byte address 0x4 - core index']
  #allocation1 [shape = 'u32[144,128]{1,0:T(1,128)}', space=vmem, size = 0x12000, scoped, tag = 'internal scratch']
  #allocation2 [shape = 's32[1]{0}', space=sflag, size = 0x4, scoped, tag = 'scoped memory for tpu_custom_call.1']
  #allocation3 [shape = 'u8[512]{0}', space=smem, size = 0x200, scoped, tag = 'prefetched SMEM operand 0']
  %s0 = inlined_call_operand.hbm [shape: s32[2], index: 0, kind: input, shape index: {}]
  %s1 = inlined_call_operand.hbm [shape: f32[3,2,8,32], index: 1, kind: input, shape index: {}]
  %s2 = inlined_call_operand.hbm [shape: f32[3,2,8,16], index: 2, kind: input, shape index: {}]
  %s3 = inlined_call_operand.vmem [shape: f32[3,2,4,8], index: 3, kind: input, shape index: {}]
  %s4 = inlined_call_operand.hbm [shape: bf16[3,2,8,16], index: 4, kind: input, shape index: {}]
  %s5 = inlined_call_operand.hbm [shape: bf16[3,2,16,16], index: 5, kind: input, shape index: {}]
  %s6 = inlined_call_operand.vmem [shape: f32[2,8,32], index: 6, kind: input, shape index: {}]
  %s7 = inlined_call_operand.hbm [shape: f32[2,8,16], index: 7, kind: input, shape index: {}]
  %s8 = inlined_call_operand.vmem [shape: f32[2,8,1], index: 8, kind: input, shape index: {}]
  %s9 = inlined_call_operand.vmem [shape: s8[2,8,16], index: 9, kind: input, shape index: {}]
  %s10 = inlined_call_operand.vmem [shape: f32[2,4,8], index: 10, kind: input, shape index: {}]
  %s11 = inlined_call_operand.vmem [shape: f32[2,1,8], index: 11, kind: input, shape index: {}]
  %s12 = inlined_call_operand.hbm [shape: f32[3,1,128], index: 12, kind: output, shape index: {}]
  %s13 = sld [smem:[#allocation0]]
  $region101: #{tpu_custom_call.1} parent=0
    _
  %s15 = ssub.s32 1, %s13
  %s16 = scalar_select 0, %s15, %s13
  %18 = dma.hbm_to_smem %s0, 16, [#allocation3], [#allocation2]
  %19 = dma.done [#allocation2], 16
  %20 = sfence
  $region1: #{tpu_custom_call.1} parent=0
    #allocation4 [shape = 'u8[8192]{0}', space=vmem, size = 0x2000, scoped, tag = 'input window, operand 1']
    #allocation5 [shape = 's32[2]{0}', space=sflag, size = 0x8, scoped, tag = 'scoped memory for tpu_custom_call.1']
    #allocation6 [shape = 's32[2]{0}', space=sflag, size = 0x8, scoped, tag = 'scoped memory for tpu_custom_call.1']
    #allocation7 [shape = 'u8[8192]{0}', space=vmem, size = 0x2000, scoped, tag = 'input window, operand 2']
    #allocation8 [shape = 's32[2]{0}', space=sflag, size = 0x8, scoped, tag = 'scoped memory for tpu_custom_call.1']
    #allocation9 [shape = 'u8[4096]{0}', space=vmem, size = 0x1000, scoped, tag = 'input window, operand 4']
    #allocation10 [shape = 'u8[8192]{0}', space=vmem, size = 0x2000, scoped, tag = 'input window, operand 5']
    #allocation11 [shape = 's32[2]{0}', space=sflag, size = 0x8, scoped, tag = 'scoped memory for tpu_custom_call.1']
    #allocation12 [shape = 'u8[8192]{0}', space=vmem, size = 0x2000, scoped, tag = 'input window, operand 7']
    #allocation13 [shape = 'u8[1024]{0}', space=vmem, size = 0x400, scoped, tag = 'output window, operand 0']
    %21 = vsyncpa [#allocation5], 0
    %s22 = scalar_lea.sflag [#allocation5], 1
    %23 = vsyncpa %s22, 0
    %24 = vsyncpa [#allocation8], 0
    %s25 = scalar_lea.sflag [#allocation8], 1
    %26 = vsyncpa %s25, 0
    %27 = vsyncpa [#allocation11], 0
    %s28 = scalar_lea.sflag [#allocation11], 1
    %29 = vsyncpa %s28, 0
    %30 = vsyncpa [#allocation6], 0
    %s31 = scalar_lea.sflag [#allocation6], 1
    %32 = vsyncpa %s31, 0
    loop: start=0, step=1, limit=8
    $region2: #{tpu_custom_call.1} parent=1 // loop_pre_header
      _
    $region3: #{tpu_custom_call.1} parent=1 // loop_header
      %s34 = sphi 0, %s38
      %p35 = scmp.ge.s32.totalorder %s34, 8
      %s41 = sphi 0, %s53
      %s42 = sphi 0, %s49
      %s43 = sphi 0, %s41
      %s44 = sphi 0, %s42
      %s45 = sphi 0, %s43
      %s46 = sphi 0, %s44
      %s58 = sphi 0, %s60
      %s61 = sphi 0, %s58
      %s62 = sphi 0, %s61
      %s78 = sphi 0, %s62
      %s86 = sphi 0, %s88
      %s89 = sphi 0, %s86
      %s90 = sphi 0, %s89
      %s106 = sphi 0, %s90
      %s114 = sphi 0, %s116
      %s117 = sphi 0, %s114
      %s118 = sphi 0, %s117
      %s134 = sphi 0, %s118
      %s142 = sphi 0, %s144
      %s145 = sphi 0, %s142
      %s146 = sphi 0, %s145
      %s162 = sphi 0, %s146
      %s170 = sphi 0, %s172
      %s173 = sphi 0, %s170
      %s174 = sphi 0, %s173
      %s190 = sphi 0, %s174
      %s196 = sphi 0, %s198
      %s199 = sphi 0, %s196
      %s200 = sphi 0, %s199
      %s216 = sphi 0, %s200
      %s222 = sphi 0, %s224
      %s225 = sphi 0, %s222
      %s226 = sphi 0, %s225
      %s242 = sphi 0, %s226
      %s248 = sphi 0, %s250
      %s251 = sphi 0, %s248
      %s252 = sphi 0, %s251
      %s268 = sphi 0, %s252
      %s274 = sphi 0, %s276
      %s277 = sphi 0, %s274
      %s278 = sphi 0, %s277
      %s294 = sphi 0, %s278
      %s300 = sphi 0, %s302
      %s303 = sphi 0, %s300
      %s304 = sphi 0, %s303
      %s320 = sphi 0, %s304
      %s326 = sphi 0, %s328
      %s329 = sphi 0, %s326
      %s330 = sphi 0, %s329
      %s346 = sphi 0, %s330
      %s352 = sphi 0, %s354
      %s355 = sphi 0, %s352
      %s356 = sphi 0, %s355
      %s372 = sphi 0, %s356
    $region4: #{tpu_custom_call.1} parent=1 // loop_header_branch
      %37 = sbr.rel (%p35) target = $region8
    $region5: #{tpu_custom_call.1} parent=1 // loop_body
      %s39 = ssub.s32 %s34, 1
      %s40 = ssub.s32 %s34, 2
      %s47 = sadd.s32 1, %s42
      %p48 = scmp.ge.s32.totalorder %s47, 2
      %s49 = scalar_select %p48, 0, %s47
      %s50 = sadd.s32 1, %s41
      %s51 = scalar_select %p48, %s50, %s41
      %p52 = scmp.ge.s32.totalorder %s51, 3
      %s53 = scalar_select %p52, 0, %s51
      %s54 = ssub.s32 %s41, %s53
      %s55 = ssub.s32 %s42, %s49
      %s56 = sor.u32 %s54, %s55
      %p57 = scmp.eq.s32.totalorder %s56, 0
      %s59 = sadd.s32 %s58, 1
      %s60 = scalar_select %p57, %s58, %s59
      %p63 = pneg %p57
      %p64 = scmp.eq.s32.totalorder %s34, 5
      %p65 = por %p63, %p64
      %p66 = scmp.ne.s32.totalorder %s58, %s61
      %p67 = scmp.eq.s32.totalorder %s34, 0
      %p68 = por %p66, %p67
      %p69 = scmp.ne.s32.totalorder %s58, %s61
      %p70 = scmp.eq.s32.totalorder %s39, 5
      %p71 = por %p69, %p70
      %p72 = scmp.ne.s32.totalorder %s61, %s62
      %p73 = scmp.eq.s32.totalorder %s39, 0
      %p74 = por %p72, %p73
      %p75 = scmp.ne.s32.totalorder %s61, %s62
      %p76 = scmp.eq.s32.totalorder %s40, 5
      %p77 = por %p75, %p76
      %p79 = scmp.ne.s32.totalorder %s62, %s78
      %p80 = scmp.eq.s32.totalorder %s40, 0
      %p81 = por %p79, %p80
      %s82 = ssub.s32 %s41, %s53
      %s83 = ssub.s32 %s42, %s49
      %s84 = sor.u32 %s82, %s83
      %p85 = scmp.eq.s32.totalorder %s84, 0
      %s87 = sadd.s32 %s86, 1
      %s88 = scalar_select %p85, %s86, %s87
      %p91 = pneg %p85
      %p92 = scmp.eq.s32.totalorder %s34, 5
      %p93 = por %p91, %p92
      %p94 = scmp.ne.s32.totalorder %s86, %s89
      %p95 = scmp.eq.s32.totalorder %s34, 0
      %p96 = por %p94, %p95
      %p97 = scmp.ne.s32.totalorder %s86, %s89
      %p98 = scmp.eq.s32.totalorder %s39, 5
      %p99 = por %p97, %p98
      %p100 = scmp.ne.s32.totalorder %s89, %s90
      %p101 = scmp.eq.s32.totalorder %s39, 0
      %p102 = por %p100, %p101
      %p103 = scmp.ne.s32.totalorder %s89, %s90
      %p104 = scmp.eq.s32.totalorder %s40, 5
      %p105 = por %p103, %p104
      %p107 = scmp.ne.s32.totalorder %s90, %s106
      %p108 = scmp.eq.s32.totalorder %s40, 0
      %p109 = por %p107, %p108
      %s110 = ssub.s32 %s41, %s53
      %s111 = ssub.s32 %s42, %s49
      %s112 = sor.u32 %s110, %s111
      %p113 = scmp.eq.s32.totalorder %s112, 0
      %s115 = sadd.s32 %s114, 1
      %s116 = scalar_select %p113, %s114, %s115
      %p119 = pneg %p113
      %p120 = scmp.eq.s32.totalorder %s34, 5
      %p121 = por %p119, %p120
      %p122 = scmp.ne.s32.totalorder %s114, %s117
      %p123 = scmp.eq.s32.totalorder %s34, 0
      %p124 = por %p122, %p123
      %p125 = scmp.ne.s32.totalorder %s114, %s117
      %p126 = scmp.eq.s32.totalorder %s39, 5
      %p127 = por %p125, %p126
      %p128 = scmp.ne.s32.totalorder %s117, %s118
      %p129 = scmp.eq.s32.totalorder %s39, 0
      %p130 = por %p128, %p129
      %p131 = scmp.ne.s32.totalorder %s117, %s118
      %p132 = scmp.eq.s32.totalorder %s40, 5
      %p133 = por %p131, %p132
      %p135 = scmp.ne.s32.totalorder %s118, %s134
      %p136 = scmp.eq.s32.totalorder %s40, 0
      %p137 = por %p135, %p136
      %s138 = ssub.s32 %s41, %s53
      %s139 = ssub.s32 %s42, %s49
      %s140 = sor.u32 %s138, %s139
      %p141 = scmp.eq.s32.totalorder %s140, 0
      %s143 = sadd.s32 %s142, 1
      %s144 = scalar_select %p141, %s142, %s143
      %p147 = pneg %p141
      %p148 = scmp.eq.s32.totalorder %s34, 5
      %p149 = por %p147, %p148
      %p150 = scmp.ne.s32.totalorder %s142, %s145
      %p151 = scmp.eq.s32.totalorder %s34, 0
      %p152 = por %p150, %p151
      %p153 = scmp.ne.s32.totalorder %s142, %s145
      %p154 = scmp.eq.s32.totalorder %s39, 5
      %p155 = por %p153, %p154
      %p156 = scmp.ne.s32.totalorder %s145, %s146
      %p157 = scmp.eq.s32.totalorder %s39, 0
      %p158 = por %p156, %p157
      %p159 = scmp.ne.s32.totalorder %s145, %s146
      %p160 = scmp.eq.s32.totalorder %s40, 5
      %p161 = por %p159, %p160
      %p163 = scmp.ne.s32.totalorder %s146, %s162
      %p164 = scmp.eq.s32.totalorder %s40, 0
      %p165 = por %p163, %p164
      %s166 = ssub.s32 %s41, %s53
      %s167 = ssub.s32 %s42, %s49
      %s168 = sor.u32 %s166, %s167
      %p169 = scmp.eq.s32.totalorder %s168, 0
      %s171 = sadd.s32 %s170, 1
      %s172 = scalar_select %p169, %s170, %s171
      %p175 = pneg %p169
      %p176 = scmp.eq.s32.totalorder %s34, 5
      %p177 = por %p175, %p176
      %p178 = scmp.ne.s32.totalorder %s170, %s173
      %p179 = scmp.eq.s32.totalorder %s34, 0
      %p180 = por %p178, %p179
      %p181 = scmp.ne.s32.totalorder %s170, %s173
      %p182 = scmp.eq.s32.totalorder %s39, 5
      %p183 = por %p181, %p182
      %p184 = scmp.ne.s32.totalorder %s173, %s174
      %p185 = scmp.eq.s32.totalorder %s39, 0
      %p186 = por %p184, %p185
      %p187 = scmp.ne.s32.totalorder %s173, %s174
      %p188 = scmp.eq.s32.totalorder %s40, 5
      %p189 = por %p187, %p188
      %p191 = scmp.ne.s32.totalorder %s174, %s190
      %p192 = scmp.eq.s32.totalorder %s40, 0
      %p193 = por %p191, %p192
      %s194 = ssub.s32 %s42, %s49
      %p195 = scmp.eq.s32.totalorder %s194, 0
      %s197 = sadd.s32 %s196, 1
      %s198 = scalar_select %p195, %s196, %s197
      %p201 = pneg %p195
      %p202 = scmp.eq.s32.totalorder %s34, 5
      %p203 = por %p201, %p202
      %p204 = scmp.ne.s32.totalorder %s196, %s199
      %p205 = scmp.eq.s32.totalorder %s34, 0
      %p206 = por %p204, %p205
      %p207 = scmp.ne.s32.totalorder %s196, %s199
      %p208 = scmp.eq.s32.totalorder %s39, 5
      %p209 = por %p207, %p208
      %p210 = scmp.ne.s32.totalorder %s199, %s200
      %p211 = scmp.eq.s32.totalorder %s39, 0
      %p212 = por %p210, %p211
      %p213 = scmp.ne.s32.totalorder %s199, %s200
      %p214 = scmp.eq.s32.totalorder %s40, 5
      %p215 = por %p213, %p214
      %p217 = scmp.ne.s32.totalorder %s200, %s216
      %p218 = scmp.eq.s32.totalorder %s40, 0
      %p219 = por %p217, %p218
      %s220 = ssub.s32 %s42, %s49
      %p221 = scmp.eq.s32.totalorder %s220, 0
      %s223 = sadd.s32 %s222, 1
      %s224 = scalar_select %p221, %s222, %s223
      %p227 = pneg %p221
      %p228 = scmp.eq.s32.totalorder %s34, 5
      %p229 = por %p227, %p228
      %p230 = scmp.ne.s32.totalorder %s222, %s225
      %p231 = scmp.eq.s32.totalorder %s34, 0
      %p232 = por %p230, %p231
      %p233 = scmp.ne.s32.totalorder %s222, %s225
      %p234 = scmp.eq.s32.totalorder %s39, 5
      %p235 = por %p233, %p234
      %p236 = scmp.ne.s32.totalorder %s225, %s226
      %p237 = scmp.eq.s32.totalorder %s39, 0
      %p238 = por %p236, %p237
      %p239 = scmp.ne.s32.totalorder %s225, %s226
      %p240 = scmp.eq.s32.totalorder %s40, 5
      %p241 = por %p239, %p240
      %p243 = scmp.ne.s32.totalorder %s226, %s242
      %p244 = scmp.eq.s32.totalorder %s40, 0
      %p245 = por %p243, %p244
      %s246 = ssub.s32 %s42, %s49
      %p247 = scmp.eq.s32.totalorder %s246, 0
      %s249 = sadd.s32 %s248, 1
      %s250 = scalar_select %p247, %s248, %s249
      %p253 = pneg %p247
      %p254 = scmp.eq.s32.totalorder %s34, 5
      %p255 = por %p253, %p254
      %p256 = scmp.ne.s32.totalorder %s248, %s251
      %p257 = scmp.eq.s32.totalorder %s34, 0
      %p258 = por %p256, %p257
      %p259 = scmp.ne.s32.totalorder %s248, %s251
      %p260 = scmp.eq.s32.totalorder %s39, 5
      %p261 = por %p259, %p260
      %p262 = scmp.ne.s32.totalorder %s251, %s252
      %p263 = scmp.eq.s32.totalorder %s39, 0
      %p264 = por %p262, %p263
      %p265 = scmp.ne.s32.totalorder %s251, %s252
      %p266 = scmp.eq.s32.totalorder %s40, 5
      %p267 = por %p265, %p266
      %p269 = scmp.ne.s32.totalorder %s252, %s268
      %p270 = scmp.eq.s32.totalorder %s40, 0
      %p271 = por %p269, %p270
      %s272 = ssub.s32 %s42, %s49
      %p273 = scmp.eq.s32.totalorder %s272, 0
      %s275 = sadd.s32 %s274, 1
      %s276 = scalar_select %p273, %s274, %s275
      %p279 = pneg %p273
      %p280 = scmp.eq.s32.totalorder %s34, 5
      %p281 = por %p279, %p280
      %p282 = scmp.ne.s32.totalorder %s274, %s277
      %p283 = scmp.eq.s32.totalorder %s34, 0
      %p284 = por %p282, %p283
      %p285 = scmp.ne.s32.totalorder %s274, %s277
      %p286 = scmp.eq.s32.totalorder %s39, 5
      %p287 = por %p285, %p286
      %p288 = scmp.ne.s32.totalorder %s277, %s278
      %p289 = scmp.eq.s32.totalorder %s39, 0
      %p290 = por %p288, %p289
      %p291 = scmp.ne.s32.totalorder %s277, %s278
      %p292 = scmp.eq.s32.totalorder %s40, 5
      %p293 = por %p291, %p292
      %p295 = scmp.ne.s32.totalorder %s278, %s294
      %p296 = scmp.eq.s32.totalorder %s40, 0
      %p297 = por %p295, %p296
      %s298 = ssub.s32 %s42, %s49
      %p299 = scmp.eq.s32.totalorder %s298, 0
      %s301 = sadd.s32 %s300, 1
      %s302 = scalar_select %p299, %s300, %s301
      %p305 = pneg %p299
      %p306 = scmp.eq.s32.totalorder %s34, 5
      %p307 = por %p305, %p306
      %p308 = scmp.ne.s32.totalorder %s300, %s303
      %p309 = scmp.eq.s32.totalorder %s34, 0
      %p310 = por %p308, %p309
      %p311 = scmp.ne.s32.totalorder %s300, %s303
      %p312 = scmp.eq.s32.totalorder %s39, 5
      %p313 = por %p311, %p312
      %p314 = scmp.ne.s32.totalorder %s303, %s304
      %p315 = scmp.eq.s32.totalorder %s39, 0
      %p316 = por %p314, %p315
      %p317 = scmp.ne.s32.totalorder %s303, %s304
      %p318 = scmp.eq.s32.totalorder %s40, 5
      %p319 = por %p317, %p318
      %p321 = scmp.ne.s32.totalorder %s304, %s320
      %p322 = scmp.eq.s32.totalorder %s40, 0
      %p323 = por %p321, %p322
      %s324 = ssub.s32 %s42, %s49
      %p325 = scmp.eq.s32.totalorder %s324, 0
      %s327 = sadd.s32 %s326, 1
      %s328 = scalar_select %p325, %s326, %s327
      %p331 = pneg %p325
      %p332 = scmp.eq.s32.totalorder %s34, 5
      %p333 = por %p331, %p332
      %p334 = scmp.ne.s32.totalorder %s326, %s329
      %p335 = scmp.eq.s32.totalorder %s34, 0
      %p336 = por %p334, %p335
      %p337 = scmp.ne.s32.totalorder %s326, %s329
      %p338 = scmp.eq.s32.totalorder %s39, 5
      %p339 = por %p337, %p338
      %p340 = scmp.ne.s32.totalorder %s329, %s330
      %p341 = scmp.eq.s32.totalorder %s39, 0
      %p342 = por %p340, %p341
      %p343 = scmp.ne.s32.totalorder %s329, %s330
      %p344 = scmp.eq.s32.totalorder %s40, 5
      %p345 = por %p343, %p344
      %p347 = scmp.ne.s32.totalorder %s330, %s346
      %p348 = scmp.eq.s32.totalorder %s40, 0
      %p349 = por %p347, %p348
      %s350 = ssub.s32 %s41, %s53
      %p351 = scmp.eq.s32.totalorder %s350, 0
      %s353 = sadd.s32 %s352, 1
      %s354 = scalar_select %p351, %s352, %s353
      %p357 = pneg %p351
      %p358 = scmp.eq.s32.totalorder %s34, 5
      %p359 = por %p357, %p358
      %p360 = scmp.ne.s32.totalorder %s352, %s355
      %p361 = scmp.eq.s32.totalorder %s34, 0
      %p362 = por %p360, %p361
      %p363 = scmp.ne.s32.totalorder %s352, %s355
      %p364 = scmp.eq.s32.totalorder %s39, 5
      %p365 = por %p363, %p364
      %p366 = scmp.ne.s32.totalorder %s355, %s356
      %p367 = scmp.eq.s32.totalorder %s39, 0
      %p368 = por %p366, %p367
      %p369 = scmp.ne.s32.totalorder %s355, %s356
      %p370 = scmp.eq.s32.totalorder %s40, 5
      %p371 = por %p369, %p370
      %p373 = scmp.ne.s32.totalorder %s356, %s372
      %p374 = scmp.eq.s32.totalorder %s40, 0
      %p375 = por %p373, %p374
      %p376 = scmp.le.s32.totalorder 1, %s34
      %p377 = scmp.lt.s32.totalorder %s34, 7
      %p378 = pnand %p376, %p377
      %p379 = pneg %p378
      // Predicated region
      $region9: #{tpu_custom_call.1} parent=5 // pred_check
        _
      $region10: #{tpu_custom_call.1} parent=5 // pred_check_branch
        %381 = sbr.rel (%p378) target = $region12
      $region11: #{tpu_custom_call.1} parent=5 // pred_region
        %s382 = ssub.s32 %s34, 1
      $region12: #{tpu_custom_call.1} parent=5 // pred_fallthru
        _
      %p383 = scmp.lt.s32.totalorder %s34, 6
      // Predicated region
      $region13: #{tpu_custom_call.1} parent=5 // pred_check
        %p384 = pneg %p383
      $region14: #{tpu_custom_call.1} parent=5 // pred_check_branch
        %386 = sbr.rel (%p384) target = $region16
      $region15: #{tpu_custom_call.1} parent=5 // pred_region
        // Predicated region
        $region17: #{tpu_custom_call.1} parent=15 // pred_check
          %p387 = pneg %p68
        $region18: #{tpu_custom_call.1} parent=15 // pred_check_branch
          %389 = sbr.rel (%p387) target = $region20
        $region19: #{tpu_custom_call.1} parent=15 // pred_region
          %s390 = sand.u32 %s58, 1
          %s391 = scalar_lea.sflag [#allocation5], %s390
          %s392 = sand.u32 %s58, 1
          %s393 = smul.addr %s392, 8
          %s394 = scalar_lea.vmem [#allocation4], %s393
          %s396 = ssub.s32 128, 128
          %397 = vsyncadd %s391, %s396
          %s398 = smul.addr %s41, 2
          %s399 = sadd.s32 %s42, %s398
          %s400 = smul.addr %s399, 128
          %s401 = scalar_lea.hbm %s1, %s400
          %s403 = sshll.u32 %s394, 4
          %s404 = int_to_ptr.vmem [resolvable:$true] %s403
          %406 = dma.hbm_to_vmem [thread:$0]  %s401, 128, %s404, %s391
        $region20: #{tpu_custom_call.1} parent=15 // pred_fallthru
          _
        // Predicated region
        $region21: #{tpu_custom_call.1} parent=15 // pred_check
          %p407 = pneg %p96
        $region22: #{tpu_custom_call.1} parent=15 // pred_check_branch
          %409 = sbr.rel (%p407) target = $region24
        $region23: #{tpu_custom_call.1} parent=15 // pred_region
          %s410 = sand.u32 %s34, 1
          %s411 = scalar_lea.sflag [#allocation8], %s410
          %s412 = sand.u32 %s86, 1
          %s413 = smul.addr %s412, 8
          %s414 = scalar_lea.vmem [#allocation7], %s413
          %s416 = ssub.s32 128, 128
          %417 = vsyncadd %s411, %s416
          %s418 = smul.addr %s41, 2
          %s419 = sadd.s32 %s42, %s418
          %s420 = smul.addr %s419, 128
          %s421 = scalar_lea.hbm %s2, %s420
          %s423 = sshll.u32 %s414, 4
          %s424 = int_to_ptr.vmem [resolvable:$true] %s423
          %426 = dma.hbm_to_vmem [thread:$0]  %s421, 128, %s424, %s411
        $region24: #{tpu_custom_call.1} parent=15 // pred_fallthru
          _
        // Predicated region
        $region25: #{tpu_custom_call.1} parent=15 // pred_check
          %p427 = pneg %p124
        $region26: #{tpu_custom_call.1} parent=15 // pred_check_branch
          %429 = sbr.rel (%p427) target = $region28
        $region27: #{tpu_custom_call.1} parent=15 // pred_region
          %p430 = scmp.lt.s32.totalorder %s41, 2
          %s431 = scalar_select %p430, %s41, 2
          %p432 = scmp.lt.s32.totalorder %s42, 1
          %s433 = scalar_select %p432, %s42, 1
          %s434 = smul.addr %s431, 2
          %s435 = sadd.s32 %s433, %s434
          %s436 = smul.addr %s435, 4
          %s437 = scalar_lea.vmem %s3, %s436
        $region28: #{tpu_custom_call.1} parent=15 // pred_fallthru
          _
        // Predicated region
        $region29: #{tpu_custom_call.1} parent=15 // pred_check
          %p438 = pneg %p152
        $region30: #{tpu_custom_call.1} parent=15 // pred_check_branch
          %440 = sbr.rel (%p438) target = $region32
        $region31: #{tpu_custom_call.1} parent=15 // pred_region
          %s441 = sand.u32 %s34, 1
          %s442 = scalar_lea.sflag [#allocation8], %s441
          %s443 = sand.u32 %s142, 1
          %s444 = smul.addr %s443, 4
          %s445 = scalar_lea.vmem [#allocation9], %s444
          %s447 = ssub.s32 64, 64
          %448 = vsyncadd %s442, %s447
          %s449 = smul.addr %s41, 2
          %s450 = sadd.s32 %s42, %s449
          %s451 = smul.addr %s450, 64
          %s452 = scalar_lea.hbm %s4, %s451
          %s454 = sshll.u32 %s445, 4
          %s455 = int_to_ptr.vmem [resolvable:$true] %s454
          %457 = dma.hbm_to_vmem [thread:$0]  %s452, 64, %s455, %s442
        $region32: #{tpu_custom_call.1} parent=15 // pred_fallthru
          _
        // Predicated region
        $region33: #{tpu_custom_call.1} parent=15 // pred_check
          %p458 = pneg %p180
        $region34: #{tpu_custom_call.1} parent=15 // pred_check_branch
          %460 = sbr.rel (%p458) target = $region36
        $region35: #{tpu_custom_call.1} parent=15 // pred_region
          %s461 = sand.u32 %s34, 1
          %s462 = scalar_lea.sflag [#allocation11], %s461
          %s463 = sand.u32 %s170, 1
          %s464 = smul.addr %s463, 8
          %s465 = scalar_lea.vmem [#allocation10], %s464
          %s467 = ssub.s32 128, 128
          %468 = vsyncadd %s462, %s467
          %s469 = smul.addr %s42, 2
          %s470 = smul.addr %s41, 4
          %s471 = sadd.s32 %s469, %s470
          %s472 = smul.addr %s471, 64
          %s473 = scalar_lea.hbm %s5, %s472
          %s474 = sshll.u32 %s465, 4
          %s475 = int_to_ptr.vmem [resolvable:$true] %s474
          %480 = dma.hbm_to_vmem [thread:$0]  %s473, 128, %s475, %s462, 64, 64, 4
        $region36: #{tpu_custom_call.1} parent=15 // pred_fallthru
          _
        // Predicated region
        $region37: #{tpu_custom_call.1} parent=15 // pred_check
          %p481 = pneg %p206
        $region38: #{tpu_custom_call.1} parent=15 // pred_check_branch
          %483 = sbr.rel (%p481) target = $region40
        $region39: #{tpu_custom_call.1} parent=15 // pred_region
          %p484 = scmp.lt.s32.totalorder %s42, 1
          %s485 = scalar_select %p484, %s42, 1
          %s486 = smul.addr %s485, 8
          %s487 = scalar_lea.vmem %s6, %s486
        $region40: #{tpu_custom_call.1} parent=15 // pred_fallthru
          _
        // Predicated region
        $region41: #{tpu_custom_call.1} parent=15 // pred_check
          %p488 = pneg %p232
        $region42: #{tpu_custom_call.1} parent=15 // pred_check_branch
          %490 = sbr.rel (%p488) target = $region44
        $region43: #{tpu_custom_call.1} parent=15 // pred_region
          %s491 = sand.u32 %s34, 1
          %s492 = scalar_lea.sflag [#allocation11], %s491
          %s493 = sand.u32 %s222, 1
          %s494 = smul.addr %s493, 8
          %s495 = scalar_lea.vmem [#allocation12], %s494
          %s497 = ssub.s32 128, 128
          %498 = vsyncadd %s492, %s497
          %s499 = smul.addr %s42, 128
          %s500 = scalar_lea.hbm %s7, %s499
          %s502 = sshll.u32 %s495, 4
          %s503 = int_to_ptr.vmem [resolvable:$true] %s502
          %505 = dma.hbm_to_vmem [thread:$0]  %s500, 128, %s503, %s492
        $region44: #{tpu_custom_call.1} parent=15 // pred_fallthru
          _
        // Predicated region
        $region45: #{tpu_custom_call.1} parent=15 // pred_check
          %p506 = pneg %p258
        $region46: #{tpu_custom_call.1} parent=15 // pred_check_branch
          %508 = sbr.rel (%p506) target = $region48
        $region47: #{tpu_custom_call.1} parent=15 // pred_region
          %p509 = scmp.lt.s32.totalorder %s42, 1
          %s510 = scalar_select %p509, %s42, 1
          %s511 = smul.addr %s510, 8
          %s512 = scalar_lea.vmem %s8, %s511
        $region48: #{tpu_custom_call.1} parent=15 // pred_fallthru
          _
        // Predicated region
        $region49: #{tpu_custom_call.1} parent=15 // pred_check
          %p513 = pneg %p284
        $region50: #{tpu_custom_call.1} parent=15 // pred_check_branch
          %515 = sbr.rel (%p513) target = $region52
        $region51: #{tpu_custom_call.1} parent=15 // pred_region
          %p516 = scmp.lt.s32.totalorder %s42, 1
          %s517 = scalar_select %p516, %s42, 1
          %s518 = smul.addr %s517, 2
          %s519 = scalar_lea.vmem %s9, %s518
        $region52: #{tpu_custom_call.1} parent=15 // pred_fallthru
          _
        // Predicated region
        $region53: #{tpu_custom_call.1} parent=15 // pred_check
          %p520 = pneg %p310
        $region54: #{tpu_custom_call.1} parent=15 // pred_check_branch
          %522 = sbr.rel (%p520) target = $region56
        $region55: #{tpu_custom_call.1} parent=15 // pred_region
          %p523 = scmp.lt.s32.totalorder %s42, 1
          %s524 = scalar_select %p523, %s42, 1
          %s525 = smul.addr %s524, 4
          %s526 = scalar_lea.vmem %s10, %s525
        $region56: #{tpu_custom_call.1} parent=15 // pred_fallthru
          _
        // Predicated region
        $region57: #{tpu_custom_call.1} parent=15 // pred_check
          %p527 = pneg %p336
        $region58: #{tpu_custom_call.1} parent=15 // pred_check_branch
          %529 = sbr.rel (%p527) target = $region60
        $region59: #{tpu_custom_call.1} parent=15 // pred_region
          %p530 = scmp.lt.s32.totalorder %s42, 1
          %s531 = scalar_select %p530, %s42, 1
          %s532 = scalar_lea.vmem %s11, %s531
        $region60: #{tpu_custom_call.1} parent=15 // pred_fallthru
          _
      $region16: #{tpu_custom_call.1} parent=5 // pred_fallthru
        _
      %p533 = scmp.le.s32.totalorder 1, %s34
      %p534 = scmp.lt.s32.totalorder %s34, 7
      %p535 = pnand %p533, %p534
      %p536 = pneg %p535
      // Predicated region
      $region61: #{tpu_custom_call.1} parent=5 // pred_check
        _
      $region62: #{tpu_custom_call.1} parent=5 // pred_check_branch
        %538 = sbr.rel (%p535) target = $region64
      $region63: #{tpu_custom_call.1} parent=5 // pred_region
        %s539 = ssub.s32 %s34, 1
        %s540 = sand.u32 %s61, 1
        %s541 = scalar_lea.sflag [#allocation5], %s540
        %s542 = sand.u32 %s61, 1
        %s543 = smul.addr %s542, 8
        %s544 = scalar_lea.vmem [#allocation4], %s543
        // Predicated region
        $region65: #{tpu_custom_call.1} parent=63 // pred_check
          %p545 = pneg %p74
        $region66: #{tpu_custom_call.1} parent=63 // pred_check_branch
          %547 = sbr.rel (%p545) target = $region68
        $region67: #{tpu_custom_call.1} parent=63 // pred_region
          %548 = dma.done %s541, 128
        $region68: #{tpu_custom_call.1} parent=63 // pred_fallthru
          _
        %s549 = sand.u32 %s39, 1
        %s550 = scalar_lea.sflag [#allocation8], %s549
        %s551 = sand.u32 %s89, 1
        %s552 = smul.addr %s551, 8
        %s553 = scalar_lea.vmem [#allocation7], %s552
        // Predicated region
        $region69: #{tpu_custom_call.1} parent=63 // pred_check
          %p554 = pneg %p102
        $region70: #{tpu_custom_call.1} parent=63 // pred_check_branch
          %556 = sbr.rel (%p554) target = $region72
        $region71: #{tpu_custom_call.1} parent=63 // pred_region
          %557 = dma.done %s550, 128
        $region72: #{tpu_custom_call.1} parent=63 // pred_fallthru
          _
        %s558 = sand.u32 %s39, 1
        %s559 = scalar_lea.sflag [#allocation8], %s558
        %s560 = sand.u32 %s145, 1
        %s561 = smul.addr %s560, 4
        %s562 = scalar_lea.vmem [#allocation9], %s561
        // Predicated region
        $region73: #{tpu_custom_call.1} parent=63 // pred_check
          %p563 = pneg %p158
        $region74: #{tpu_custom_call.1} parent=63 // pred_check_branch
          %565 = sbr.rel (%p563) target = $region76
        $region75: #{tpu_custom_call.1} parent=63 // pred_region
          %566 = dma.done %s559, 64
        $region76: #{tpu_custom_call.1} parent=63 // pred_fallthru
          _
        %s567 = sand.u32 %s39, 1
        %s568 = scalar_lea.sflag [#allocation11], %s567
        %s569 = sand.u32 %s173, 1
        %s570 = smul.addr %s569, 8
        %s571 = scalar_lea.vmem [#allocation10], %s570
        // Predicated region
        $region77: #{tpu_custom_call.1} parent=63 // pred_check
          %p572 = pneg %p186
        $region78: #{tpu_custom_call.1} parent=63 // pred_check_branch
          %574 = sbr.rel (%p572) target = $region80
        $region79: #{tpu_custom_call.1} parent=63 // pred_region
          %575 = dma.done %s568, 128
        $region80: #{tpu_custom_call.1} parent=63 // pred_fallthru
          _
        %s576 = sand.u32 %s39, 1
        %s577 = scalar_lea.sflag [#allocation11], %s576
        %s578 = sand.u32 %s225, 1
        %s579 = smul.addr %s578, 8
        %s580 = scalar_lea.vmem [#allocation12], %s579
        // Predicated region
        $region81: #{tpu_custom_call.1} parent=63 // pred_check
          %p581 = pneg %p238
        $region82: #{tpu_custom_call.1} parent=63 // pred_check_branch
          %583 = sbr.rel (%p581) target = $region84
        $region83: #{tpu_custom_call.1} parent=63 // pred_region
          %584 = dma.done %s577, 128
        $region84: #{tpu_custom_call.1} parent=63 // pred_fallthru
          _
        %s585 = sand.u32 %s61, 1
        %s586 = scalar_lea.sflag [#allocation5], %s585
        %s587 = sand.u32 %s61, 1
        %s588 = smul.addr %s587, 8
        %s589 = scalar_lea.vmem [#allocation4], %s588
        %p590 = pneg %p74
        %p591 = pneg %p71
        %s592 = sand.u32 %s39, 1
        %s593 = scalar_lea.sflag [#allocation8], %s592
        %s594 = sand.u32 %s89, 1
        %s595 = smul.addr %s594, 8
        %s596 = scalar_lea.vmem [#allocation7], %s595
        %p597 = pneg %p102
        %p598 = pneg %p99
        %p599 = scmp.lt.s32.totalorder %s43, 2
        %s600 = scalar_select %p599, %s43, 2
        %p601 = scmp.lt.s32.totalorder %s44, 1
        %s602 = scalar_select %p601, %s44, 1
        %s603 = smul.addr %s600, 2
        %s604 = sadd.s32 %s602, %s603
        %s605 = smul.addr %s604, 4
        %s606 = scalar_lea.vmem %s3, %s605
        %p607 = pneg %p130
        %p608 = pneg %p127
        %s609 = sand.u32 %s39, 1
        %s610 = scalar_lea.sflag [#allocation8], %s609
        %s611 = sand.u32 %s145, 1
        %s612 = smul.addr %s611, 4
        %s613 = scalar_lea.vmem [#allocation9], %s612
        %p614 = pneg %p158
        %p615 = pneg %p155
        %s616 = sand.u32 %s39, 1
        %s617 = scalar_lea.sflag [#allocation11], %s616
        %s618 = sand.u32 %s173, 1
        %s619 = smul.addr %s618, 8
        %s620 = scalar_lea.vmem [#allocation10], %s619
        %p621 = pneg %p186
        %p622 = pneg %p183
        %p623 = scmp.lt.s32.totalorder %s44, 1
        %s624 = scalar_select %p623, %s44, 1
        %s625 = smul.addr %s624, 8
        %s626 = scalar_lea.vmem %s6, %s625
        %p627 = pneg %p212
        %p628 = pneg %p209
        %s629 = sand.u32 %s39, 1
        %s630 = scalar_lea.sflag [#allocation11], %s629
        %s631 = sand.u32 %s225, 1
        %s632 = smul.addr %s631, 8
        %s633 = scalar_lea.vmem [#allocation12], %s632
        %p634 = pneg %p238
        %p635 = pneg %p235
        %p636 = scmp.lt.s32.totalorder %s44, 1
        %s637 = scalar_select %p636, %s44, 1
        %s638 = smul.addr %s637, 8
        %s639 = scalar_lea.vmem %s8, %s638
        %p640 = pneg %p264
        %p641 = pneg %p261
        %p642 = scmp.lt.s32.totalorder %s44, 1
        %s643 = scalar_select %p642, %s44, 1
        %s644 = smul.addr %s643, 2
        %s645 = scalar_lea.vmem %s9, %s644
        %p646 = pneg %p290
        %p647 = pneg %p287
        %p648 = scmp.lt.s32.totalorder %s44, 1
        %s649 = scalar_select %p648, %s44, 1
        %s650 = smul.addr %s649, 4
        %s651 = scalar_lea.vmem %s10, %s650
        %p652 = pneg %p316
        %p653 = pneg %p313
        %p654 = scmp.lt.s32.totalorder %s44, 1
        %s655 = scalar_select %p654, %s44, 1
        %s656 = scalar_lea.vmem %s11, %s655
        %p657 = pneg %p342
        %p658 = pneg %p339
        %p659 = pneg %p368
        %p660 = pneg %p365
        %s661 = sand.u32 %s355, 1
        %s662 = scalar_lea.sflag [#allocation6], %s661
        %s663 = sand.u32 %s355, 1
        %s664 = scalar_lea.vmem [#allocation13], %s663
        %p665 = scmp.lt.s32.totalorder %s43, 2
        %s666 = scalar_select %p665, %s43, 2
        %p667 = scmp.lt.s32.totalorder %s44, 1
        %s668 = scalar_select %p667, %s44, 1
        %s669 = smul.addr %s666, 2
        %s670 = sadd.s32 %s668, %s669
        %s671 = smul.addr %s670, 4
        %s672 = scalar_lea.vmem %s3, %s671
        %p673 = scmp.lt.s32.totalorder %s44, 1
        %s674 = scalar_select %p673, %s44, 1
        %s675 = smul.addr %s674, 8
        %s676 = scalar_lea.vmem %s6, %s675
        %p677 = scmp.lt.s32.totalorder %s44, 1
        %s678 = scalar_select %p677, %s44, 1
        %s679 = smul.addr %s678, 8
        %s680 = scalar_lea.vmem %s8, %s679
        %p681 = scmp.lt.s32.totalorder %s44, 1
        %s682 = scalar_select %p681, %s44, 1
        %s683 = smul.addr %s682, 2
        %s684 = scalar_lea.vmem %s9, %s683
        %p685 = scmp.lt.s32.totalorder %s44, 1
        %s686 = scalar_select %p685, %s44, 1
        %s687 = smul.addr %s686, 4
        %s688 = scalar_lea.vmem %s10, %s687
        %p689 = scmp.lt.s32.totalorder %s44, 1
        %s690 = scalar_select %p689, %s44, 1
        %s691 = scalar_lea.vmem %s11, %s690
        %p693 = scmp.eq.s32.totalorder %s44, 0
        // Predicated region
        $region85: #{tpu_custom_call.1} parent=63 // pred_check
          %p694 = pneg %p693
        $region86: #{tpu_custom_call.1} parent=63 // pred_check_branch
          %696 = sbr.rel (%p694) target = $region88
        $region87: #{tpu_custom_call.1} parent=63 // pred_region
          %697 = vst [vmem:[%s664] sm:$0x1] 0.0
        $region88: #{tpu_custom_call.1} parent=63 // pred_fallthru
          _
        %v698 = vld [vmem:[%s544] sm:$0xff]
        %v699 = vld [vmem:[%s680] sm:$0xff]
        %v700 = vld [vmem:[%s676] sm:$0xff]
        %vm701 = vcmask 261120
        %v702 = vsel %vm701, %v698, -inf
        %703 = vmax.xlane.f32.xlu0 %v702
        %v704 = vpop.xlane.xlu0 %703
        %v705 = vsub.f32 %v698, %v704
        %v706 = vmul.f32 %v705, 1.442695
        %v707 = vpow.pop %v706
        %v708 = vsel %vm701, %v707, 0.0
        %709 = vadd.xlane.f32.xlu0 %v708
        %v710 = vpop.xlane.xlu0 %709
        %v711 = vlog2.pop %v710
        %v712 = vmul.f32 %v711, 0.6931472
        %v713 = vadd.f32 %v704, %v712
        %v714 = vsel %vm701, %v700, 0.0
        %715 = vadd.xlane.f32.xlu0 %v714
        %v716 = vpop.xlane.xlu0 %715
        %v717 = vmul.f32 %v713, %v716
        %v718 = vmul.f32 %v698, %v700
        %v719 = vsel %vm701, %v718, 0.0
        %720 = vadd.xlane.f32.xlu0 %v719
        %v721 = vpop.xlane.xlu0 %720
        %v722 = vsub.f32 %v717, %v721
        %v723 = vmul.f32 %v722, %v699
        %vm724 = vcmask 7168
        %v725 = vsel %vm724, %v723, 0.0
        %726 = vadd.xlane.f32.xlu0 %v725
        %v727 = vpop.xlane.xlu0 %726
        %v728 = vrot.slane %v727, 4
        %v729 = vadd.f32 %v727, %v728
        %v730 = vrot.slane %v729, 2
        %v731 = vadd.f32 %v729, %v730
        %v732 = vrot.slane %v731, 1
        %v733 = vadd.f32 %v731, %v732
        %s734 = vtos %v733
        %v735 = vld [vmem:[%s553] sm:$0xff]
        %v736 = vld [vmem:[%s580] sm:$0xff]
        %vm737 = vcmask 130048
        %v738 = vsel %vm737, %v735, -inf
        %739 = vmax.xlane.f32.xlu0 %v738
        %v740 = vpop.xlane.xlu0 %739
        %v741 = vsub.f32 %v735, %v740
        %v742 = vmul.f32 %v741, 1.442695
        %v743 = vpow.pop %v742
        %v744 = vsel %vm737, %v743, 0.0
        %745 = vadd.xlane.f32.xlu0 %v744
        %v746 = vpop.xlane.xlu0 %745
        %v747 = vlog2.pop %v746
        %v748 = vmul.f32 %v747, 0.6931472
        %v749 = vadd.f32 %v740, %v748
        %v750 = vsel %vm737, %v736, 0.0
        %751 = vadd.xlane.f32.xlu0 %v750
        %v752 = vpop.xlane.xlu0 %751
        %v753 = vmul.f32 %v749, %v752
        %v754 = vmul.f32 %v735, %v736
        %v755 = vsel %vm737, %v754, 0.0
        %756 = vadd.xlane.f32.xlu0 %v755
        %v757 = vpop.xlane.xlu0 %756
        %v758 = vsub.f32 %v753, %v757
        %v759 = vmul.f32 %v758, %v699
        %v760 = vsel %vm724, %v759, 0.0
        %761 = vadd.xlane.f32.xlu0 %v760
        %v762 = vpop.xlane.xlu0 %761
        %v763 = vrot.slane %v762, 4
        %v764 = vadd.f32 %v762, %v763
        %v765 = vrot.slane %v764, 2
        %v766 = vadd.f32 %v764, %v765
        %v767 = vrot.slane %v766, 1
        %v768 = vadd.f32 %v766, %v767
        %s769 = vtos %v768
        %vm770 = vcmask 252928
        %v771 = vsel %vm770, %v698, -inf
        %772 = vmax.xlane.f32.xlu0 %v771
        %v773 = vpop.xlane.xlu0 %772
        %vm774 = vcmp.ge.f32.partialorder %v773, %v698
        %v775 = vsel %vm774, 1, 0
        %v776 = vcvt.s32.f32 %v775
        %778 = vrot.lane.b32.xlu0 %v776, 97
        %v779 = vpop.permute.xlu0 %778
        %v781 = vsel %vm724, %v779, 0.0
        %782 = vadd.xlane.f32.xlu0 %v781
        %v783 = vpop.xlane.xlu0 %782
        %v784 = vrot.slane %v783, 4
        %v785 = vadd.f32 %v783, %v784
        %v786 = vrot.slane %v785, 2
        %v787 = vadd.f32 %v785, %v786
        %v788 = vrot.slane %v787, 1
        %v789 = vadd.f32 %v787, %v788
        %s790 = vtos %v789
        %s791 = sld [smem:[#allocation3 + %s44]]
        %s792 = scvt.s32.f32 %s791
        %s793 = ssub.f32 %s790, %s792
        %s794 = sand.u32 2147483647, %s793
        %v795 = vld [vmem:[%s672] sm:$0xf]
        %v796 = vld [vmem:[%s688] sm:$0xf]
        %v797 = vld [vmem:[%s691] sm:$0x1]
        %v798 = vsub.f32 %v795, %v796
        %v799 = vand.u32 2147483647, %v798
        %v801 = vlaneseq
        %v802 = vshrl.u32 %v801, 7
        %v803 = vsub.s32 0, %v802
        %v804 = vrot.slane %v797, %v803
        %v806 = vmul.f32 %v799, %v804
        %vm807 = vcmask 60416
        %v808 = vsel %vm807, %v806, 0.0
        %809 = vadd.xlane.f32.xlu0 %v808
        %v810 = vpop.xlane.xlu0 %809
        %v811 = vrot.slane %v810, 4
        %v812 = vadd.f32 %v810, %v811
        %v813 = vrot.slane %v812, 2
        %v814 = vadd.f32 %v812, %v813
        %v815 = vrot.slane %v814, 1
        %v816 = vadd.f32 %v814, %v815
        %s817 = vtos %v816
        %v818 = vmul.f32 %v795, 0.5
        %v820 = vrot.slane %v818, 2
        %v822 = vsub.f32 %v795, %v820
        %v823 = vadd.f32 %v795, %v820
        %v824 = vmul.f32 %v796, 0.5
        %v826 = vrot.slane %v824, 2
        %v828 = vsub.f32 %v796, %v826
        %v829 = vadd.f32 %v796, %v826
        %v830 = vsub.f32 %v823, %v822
        %v832 = vrot.slane %v830, 1
        %v834 = vmul.f32 %v830, %v832
        %v835 = vsub.f32 %v829, %v828
        %v837 = vrot.slane %v835, 1
        %v839 = vmul.f32 %v835, %v837
        %v840 = vmax.f32 %v822, %v828
        %v841 = vmin.f32 %v823, %v829
        %v842 = vsub.f32 %v841, %v840
        %v843 = vmax.f32 %v842, 0.0
        %v845 = vrot.slane %v843, 1
        %v847 = vmul.f32 %v843, %v845
        %v848 = vadd.f32 %v834, %v839
        %v849 = vsub.f32 %v848, %v847
        %v850 = vadd.f32 %v849, 1e-06
        %v851 = vrcp.pop %v850
        %v852 = vmul.f32 %v847, %v851
        %v853 = vmin.f32 %v822, %v828
        %v854 = vmax.f32 %v823, %v829
        %v855 = vsub.f32 %v854, %v853
        %v857 = vrot.slane %v855, 1
        %v859 = vmul.f32 %v855, %v857
        %v860 = vsub.f32 %v859, %v849
        %v861 = vadd.f32 %v859, 1e-06
        %v862 = vrcp.pop %v861
        %v863 = vmul.f32 %v860, %v862
        %v864 = vsub.f32 %v852, %v863
        %v865 = vsub.f32 1.0, %v864
        %v866 = vmul.f32 %v865, %v797
        %vm867 = vcmask 57344
        %v868 = vsel %vm867, %v866, 0.0
        %869 = vadd.xlane.f32.xlu0 %v868
        %v870 = vpop.xlane.xlu0 %869
        %v871 = vrot.slane %v870, 4
        %v872 = vadd.f32 %v870, %v871
        %v873 = vrot.slane %v872, 2
        %v874 = vadd.f32 %v872, %v873
        %v875 = vrot.slane %v874, 1
        %v876 = vadd.f32 %v874, %v875
        %s877 = vtos %v876
        %v878 = vld [vmem:[%s562] sm:$0xf]
        %v879 = vld [vmem:[%s571] sm:$0xf]
        %v880 = vld [vmem:[%s571 + $0x4] sm:$0xf]
        %v883 = vunpack.c.l.b16 %v879
        %v884 = vunpack.c.l.b16 %v880
        %v885 = vpack.c.b16 %v884, %v883
        %v888 = vsel %vm737, %v878, 0
        %890 = vmatprep.subr.bf16.mxu0 0
        %891 = vmatpush1.bf16.msra.mxu0 %v885
        %892 = vmatprep.subr.bf16.mxu0 0
        %893 = vmatpush1.bf16.msra.mxu0 0
        %894 = vmatprep.subr.bf16.mxu0 0
        %895 = vmatpush1.bf16.msra.mxu0 0
        %896 = vmatprep.subr.bf16.mxu0 0
        %897 = vmatpush1.bf16.msra.mxu0 0
        %898 = vmatprep.subr.bf16.mxu0 0
        %899 = vmatpush1.bf16.msra.mxu0 0
        %900 = vmatprep.subr.bf16.mxu0 0
        %901 = vmatpush1.bf16.msra.mxu0 0
        %902 = vmatprep.subr.bf16.mxu0 0
        %903 = vmatpush1.bf16.msra.mxu0 0
        %904 = vmatprep.subr.bf16.mxu0 0
        %905 = vmatpush1.bf16.msra.mxu0 0
        %906 = vmatprep.subr.bf16.mxu0 0
        %907 = vmatpush1.bf16.msra.mxu0 0
        %908 = vmatprep.subr.bf16.mxu0 0
        %909 = vmatpush1.bf16.msra.mxu0 0
        %910 = vmatprep.subr.bf16.mxu0 0
        %911 = vmatpush1.bf16.msra.mxu0 0
        %912 = vmatprep.subr.bf16.mxu0 0
        %913 = vmatpush1.bf16.msra.mxu0 0
        %914 = vmatprep.subr.bf16.mxu0 0
        %915 = vmatpush1.bf16.msra.mxu0 0
        %916 = vmatprep.subr.bf16.mxu0 0
        %917 = vmatpush1.bf16.msra.mxu0 0
        %918 = vmatprep.subr.bf16.mxu0 0
        %919 = vmatpush1.bf16.msra.mxu0 0
        %920 = vmatprep.subr.bf16.mxu0 0
        %921 = vmatpush1.bf16.msra.mxu0 0
        %922 = vmatprep.mubr.bf16.mxu0 0
        %923 = vmatmul.mubr.bf16.gmra.mrb[0].mxu0 %v888
        %v924 = vpop.f32.mrb[0].mxu0
        %v925 = vadd.f32 0.0, %v924
        %v926 = vpop.f32.mrb[0].mxu0
        %v927 = vpop.f32.mrb[0].mxu0
        %v928 = vpop.f32.mrb[0].mxu0
        %929 = vdwg.mxu0
        %v930 = vmul.f32 %v925, 14.285714
        %v931 = vld [vmem:[%s684] sm:$0x3]
        %v932 = vunpack.c.0.s8 %v931
        %v933 = vcvt.s32.f32 %v932
        %v934 = vmul.f32 %v933, %v930
        %v935 = vsub.f32 0.0, %v934
        %v936 = vsel %vm737, %v930, -inf
        %937 = vmax.xlane.f32.xlu0 %v936
        %v938 = vpop.xlane.xlu0 %937
        %v939 = vrot.slane %v938, 4
        %v940 = vmax.f32 %v938, %v939
        %v941 = vrot.slane %v940, 2
        %v942 = vmax.f32 %v940, %v941
        %v943 = vrot.slane %v942, 1
        %v944 = vmax.f32 %v942, %v943
        %s945 = vtos %v944
        %v946 = vstv %s945
        %v947 = vsub.f32 %v930, %v946
        %v948 = vmul.f32 %v947, 1.442695
        %v949 = vpow.pop %v948
        %v950 = vsel %vm737, %v933, 0.0
        %951 = vadd.xlane.f32.xlu0 %v950
        %v952 = vpop.xlane.xlu0 %951
        %v953 = vsel %vm737, %v935, 0.0
        %954 = vadd.xlane.f32.xlu0 %v953
        %v955 = vpop.xlane.xlu0 %954
        %v956 = vsel %vm737, %v949, 0.0
        %957 = vadd.xlane.f32.xlu0 %v956
        %v958 = vpop.xlane.xlu0 %957
        %v959 = vlog2.pop %v958
        %v960 = vmul.f32 %v959, 0.6931472
        %v961 = vadd.f32 %v946, %v960
        %vm962 = vcmp.gt.f32.partialorder %v952, 0.0
        %v963 = vadd.f32 %v952, 1e-06
        %v964 = vrcp.pop %v963
        %v965 = vmul.f32 %v955, %v964
        %v966 = vadd.f32 %v965, %v961
        %v967 = vsel %vm962, %v966, 0.0
        %v968 = vsel %vm724, %v967, 0.0
        %969 = vadd.xlane.f32.xlu0 %v968
        %v970 = vpop.xlane.xlu0 %969
        %v971 = vrot.slane %v970, 4
        %v972 = vadd.f32 %v970, %v971
        %v973 = vrot.slane %v972, 2
        %v974 = vadd.f32 %v972, %v973
        %v975 = vrot.slane %v974, 1
        %v976 = vadd.f32 %v974, %v975
        %s977 = vtos %v976
        %v978 = vrot.slane %v950, 4
        %v979 = vadd.f32 %v950, %v978
        %v980 = vrot.slane %v979, 2
        %v981 = vadd.f32 %v979, %v980
        %v982 = vrot.slane %v981, 1
        %v983 = vadd.f32 %v981, %v982
        %v984 = vrot.slane %v953, 4
        %v985 = vadd.f32 %v953, %v984
        %v986 = vrot.slane %v985, 2
        %v987 = vadd.f32 %v985, %v986
        %v988 = vrot.slane %v987, 1
        %v989 = vadd.f32 %v987, %v988
        %v990 = vrot.slane %v956, 4
        %v991 = vadd.f32 %v956, %v990
        %v992 = vrot.slane %v991, 2
        %v993 = vadd.f32 %v991, %v992
        %v994 = vrot.slane %v993, 1
        %v995 = vadd.f32 %v993, %v994
        %v996 = vlog2.pop %v995
        %v997 = vmul.f32 %v996, 0.6931472
        %v998 = vadd.f32 %v946, %v997
        %vm999 = vcmp.gt.f32.partialorder %v983, 0.0
        %v1000 = vadd.f32 %v983, 1e-06
        %v1001 = vrcp.pop %v1000
        %v1002 = vmul.f32 %v989, %v1001
        %v1003 = vadd.f32 %v1002, %v998
        %v1004 = vsel %vm999, %v1003, 0.0
        %vm1005 = vcmask 122880
        %v1006 = vsel %vm1005, %v1004, 0.0
        %1007 = vadd.xlane.f32.xlu0 %v1006
        %v1008 = vpop.xlane.xlu0 %1007
        %v1009 = vrot.slane %v1008, 4
        %v1010 = vadd.f32 %v1008, %v1009
        %v1011 = vrot.slane %v1010, 2
        %v1012 = vadd.f32 %v1010, %v1011
        %v1013 = vrot.slane %v1012, 1
        %v1014 = vadd.f32 %v1012, %v1013
        %s1015 = vtos %v1014
        %s1016 = sadd.f32 %s977, %s1015
        %s1017 = smul.f32 %s1016, 0.5
        %v1018 = vlaneseq
        %v1019 = vand.u32 %v1018, 127
        %v1020 = vld [vmem:[%s664] sm:$0x1]
        %vm1021 = vcmp.eq.s32.totalorder %v1019, 0
        %v1022 = vsel %vm1021, 1, 0
        %v1023 = vcvt.s32.f32 %v1022
        %v1024 = vstv %s734
        %v1025 = vmul.f32 %v1023, %v1024
        %vm1026 = vcmp.eq.s32.totalorder %v1019, 1
        %v1027 = vsel %vm1026, 1, 0
        %v1028 = vcvt.s32.f32 %v1027
        %v1029 = vstv %s769
        %v1030 = vmul.f32 %v1028, %v1029
        %v1031 = vadd.f32 %v1025, %v1030
        %vm1032 = vcmp.eq.s32.totalorder %v1019, 2
        %v1033 = vsel %vm1032, 1, 0
        %v1034 = vcvt.s32.f32 %v1033
        %v1035 = vstv %s794
        %v1036 = vmul.f32 %v1034, %v1035
        %v1037 = vadd.f32 %v1031, %v1036
        %vm1038 = vcmp.eq.s32.totalorder %v1019, 3
        %v1039 = vsel %vm1038, 1, 0
        %v1040 = vcvt.s32.f32 %v1039
        %v1041 = vstv %s817
        %v1042 = vmul.f32 %v1040, %v1041
        %v1043 = vadd.f32 %v1037, %v1042
        %vm1044 = vcmp.eq.s32.totalorder %v1019, 4
        %v1045 = vsel %vm1044, 1, 0
        %v1046 = vcvt.s32.f32 %v1045
        %v1047 = vstv %s877
        %v1048 = vmul.f32 %v1046, %v1047
        %v1049 = vadd.f32 %v1043, %v1048
        %vm1050 = vcmp.eq.s32.totalorder %v1019, 5
        %v1051 = vsel %vm1050, 1, 0
        %v1052 = vcvt.s32.f32 %v1051
        %v1053 = vstv %s1017
        %v1054 = vmul.f32 %v1052, %v1053
        %v1055 = vadd.f32 %v1049, %v1054
        %v1056 = vadd.f32 %v1020, %v1055
        %1057 = vst [vmem:[%s664] sm:$0x1] %v1056
        %s1058 = sand.u32 %s355, 1
        %s1059 = scalar_lea.sflag [#allocation6], %s1058
        %s1060 = sand.u32 %s355, 1
        %s1061 = scalar_lea.vmem [#allocation13], %s1060
        // Predicated region
        $region89: #{tpu_custom_call.1} parent=63 // pred_check
          %p1062 = pneg %p365
        $region90: #{tpu_custom_call.1} parent=63 // pred_check_branch
          %1064 = sbr.rel (%p1062) target = $region92
        $region91: #{tpu_custom_call.1} parent=63 // pred_region
          %s1066 = ssub.s32 16, 16
          %1067 = vsyncadd %s1059, %s1066
          %s1068 = smul.addr %s43, 16
          %s1069 = scalar_lea.hbm %s12, %s1068
          %s1071 = sshll.u32 %s1061, 4
          %s1072 = int_to_ptr.vmem [resolvable:$true] %s1071
          %1074 = dma.vmem_to_hbm [thread:$0]  %s1072, 16, %s1069, %s1059
        $region92: #{tpu_custom_call.1} parent=63 // pred_fallthru
          _
      $region64: #{tpu_custom_call.1} parent=5 // pred_fallthru
        _
      %p1075 = scmp.le.s32.totalorder 2, %s34
      // Predicated region
      $region93: #{tpu_custom_call.1} parent=5 // pred_check
        %p1076 = pneg %p1075
      $region94: #{tpu_custom_call.1} parent=5 // pred_check_branch
        %1078 = sbr.rel (%p1076) target = $region96
      $region95: #{tpu_custom_call.1} parent=5 // pred_region
        %s1079 = ssub.s32 %s34, 2
        // Predicated region
        $region97: #{tpu_custom_call.1} parent=95 // pred_check
          %p1080 = pneg %p371
        $region98: #{tpu_custom_call.1} parent=95 // pred_check_branch
          %1082 = sbr.rel (%p1080) target = $region100
        $region99: #{tpu_custom_call.1} parent=95 // pred_region
          %s1083 = sand.u32 %s356, 1
          %s1084 = scalar_lea.sflag [#allocation6], %s1083
          %s1085 = sand.u32 %s356, 1
          %s1086 = scalar_lea.vmem [#allocation13], %s1085
          %1087 = dma.done %s1084, 16
        $region100: #{tpu_custom_call.1} parent=95 // pred_fallthru
          _
      $region96: #{tpu_custom_call.1} parent=5 // pred_fallthru
        _
    $region6: #{tpu_custom_call.1} parent=1 // loop_footer
      %s38 = sadd.s32 1, %s34
    $region7: #{tpu_custom_call.1} parent=1 // loop_footer_branch
      %33 = sbr.rel target = $region3
    $region8: #{tpu_custom_call.1} parent=1 // loop_exit
      _
    %1088 = vsyncpa [#allocation5], 1
    %s1089 = scalar_lea.sflag [#allocation5], 1
    %1090 = vsyncpa %s1089, 1
    %1091 = vsyncpa [#allocation8], 1
    %s1092 = scalar_lea.sflag [#allocation8], 1
    %1093 = vsyncpa %s1092, 1
    %1094 = vsyncpa [#allocation11], 1
    %s1095 = scalar_lea.sflag [#allocation11], 1
    %1096 = vsyncpa %s1095, 1
    %1097 = vsyncpa [#allocation6], 1
    %s1098 = scalar_lea.sflag [#allocation6], 1
    %1099 = vsyncpa %s1098, 1

</llo_original>
